<compile_context>
chip_gen: v7x
topology: tpu7x:2x2x1
jax: 0.10.0
libtpu: 0.0.40
codegen_flags: <defaults>
</compile_context>

<pallas_src>
import jax
import jax.numpy as jnp
from jax.experimental import pallas as pl
from jax.experimental.pallas import tpu as pltpu

EPS = 1e-5

# Row-tile target: 256 rows keeps double-buffered (patches + y) tiles comfortably
# inside v7x's 64 MiB physical VMEM even for K of a few thousand; bump to 512+ on
# v5e/v6e for slightly better DMA efficiency on large activations.
ROW_TILE = 256
VMEM_LIMIT = 48 * 1024 * 1024  # < v7x 64 MiB physical, > 32 MiB default scoped.


def _pick_tile(m, target=ROW_TILE):
    """Largest divisor of m that is a multiple of 8 and <= target (else m itself)."""
    for t in range(min(m, target), 7, -1):
        if t % 8 == 0 and m % t == 0:
            return t
    return m  # a full-extent block is always a legal block shape


# ----------------------------------------------------------------------------
# Kernels
# ----------------------------------------------------------------------------
def _matmul_stats_kernel(p_ref, w_ref, y_ref, s1_ref, s2_ref):
    """Pass 1: y = patches @ W (bf16 operands, f32 MXU accumulation) + BN stats.

    s1/s2 are revisited accumulators (same block every grid step), so the row grid
    axis is marked 'arbitrary'.  Conv bias is omitted (cancelled by batch-stat BN).
    """
    @pl.when(pl.program_id(0) == 0)
    def _init():
        s1_ref[...] = jnp.zeros_like(s1_ref)
        s2_ref[...] = jnp.zeros_like(s2_ref)

    y = jnp.dot(p_ref[...], w_ref[...], preferred_element_type=jnp.float32)
    y_ref[...] = y
    s1_ref[...] = s1_ref[...] + jnp.sum(y, axis=0, keepdims=True)
    s2_ref[...] = s2_ref[...] + jnp.sum(y * y, axis=0, keepdims=True)


def _scale_relu_kernel(y_ref, ss_ref, o_ref):
    """Pass 2: out = relu(y * scale + shift)   (lane-dense folded layout)."""
    o_ref[...] = jnp.maximum(y_ref[...] * ss_ref[0:1, :] + ss_ref[1:2, :], 0.0)


def _scale_relu_add_kernel(y_ref, ss_ref, r_ref, o_ref):
    """Pass 2: out = relu(y * scale + shift) + residual (identity projection)."""
    o_ref[...] = (
        jnp.maximum(y_ref[...] * ss_ref[0:1, :] + ss_ref[1:2, :], 0.0) + r_ref[...]
    )


def _scale_relu_proj_add_kernel(y_ref, ss_ref, xs_ref, wp_ref, bp_ref, o_ref):
    """Pass 2 (block 0): out = relu(y*scale+shift) + (x_strided @ Wp + bp)."""
    act = jnp.maximum(y_ref[...] * ss_ref[0:1, :] + ss_ref[1:2, :], 0.0)
    proj = jnp.dot(xs_ref[...], wp_ref[...], preferred_element_type=jnp.float32)
    o_ref[...] = act + proj + bp_ref[...]


# ----------------------------------------------------------------------------
# pallas_call wrappers
# ----------------------------------------------------------------------------
def _matmul_stats(patches, wmat, row_tile=ROW_TILE):
    m, k = patches.shape
    c = wmat.shape[1]
    tm = _pick_tile(m, row_tile)
    nt = m // tm
    y, s1, s2 = pl.pallas_call(
        _matmul_stats_kernel,
        grid_spec=pltpu.PrefetchScalarGridSpec(
            num_scalar_prefetch=0,
            grid=(nt,),
            in_specs=[
                pl.BlockSpec((tm, k), lambda i: (i, 0)),   # patch row tile (bf16)
                pl.BlockSpec((k, c), lambda i: (0, 0)),    # weights: stay resident
            ],
            out_specs=[
                pl.BlockSpec((tm, c), lambda i: (i, 0)),   # y row tile (f32)
                pl.BlockSpec((8, c), lambda i: (0, 0)),    # sum accumulator
                pl.BlockSpec((8, c), lambda i: (0, 0)),    # sum-of-squares accumulator
            ],
        ),
        out_shape=[
            jax.ShapeDtypeStruct((m, c), jnp.float32),
            jax.ShapeDtypeStruct((8, c), jnp.float32),
            jax.ShapeDtypeStruct((8, c), jnp.float32),
        ],
        compiler_params=pltpu.CompilerParams(
            dimension_semantics=("arbitrary",),  # stats reduce over the row axis
            vmem_limit_bytes=VMEM_LIMIT,
        ),
    )(patches, wmat)
    return y, s1[0], s2[0]


def _bn_scale_shift(s1, s2, m_rows, gamma, beta):
    # Fold training-mode BatchNorm into one per-channel FMA: scale, shift (f32).
    mean = s1 / m_rows
    var = jnp.maximum(s2 / m_rows - mean * mean, 0.0)
    scale = gamma.reshape(-1) * jax.lax.rsqrt(var + EPS)
    shift = beta.reshape(-1) - mean * scale
    return scale, shift


def _scale_relu(y, scale, shift, residual=None, row_tile=ROW_TILE):
    """Gridded element-wise normalize + ReLU (+ add), lane-dense (…, 128) layout."""
    m, c = y.shape
    g = 1
    if c < 128 and 128 % c == 0 and m % (128 // c) == 0:
        g = 128 // c  # fold g rows into the lane axis -> 128-wide unmasked stores
    lanes = g * c
    mf = m // g
    yf = y.reshape(mf, lanes)
    ss = jnp.stack([jnp.tile(scale, g), jnp.tile(shift, g)]).astype(jnp.float32)
    tm = _pick_tile(mf, row_tile)
    nt = mf // tm

    in_specs = [
        pl.BlockSpec((tm, lanes), lambda i: (i, 0)),
        pl.BlockSpec((2, lanes), lambda i: (0, 0)),
    ]
    args = [yf, ss]
    if residual is None:
        kernel = _scale_relu_kernel
    else:
        kernel = _scale_relu_add_kernel
        in_specs.append(pl.BlockSpec((tm, lanes), lambda i: (i, 0)))
        args.append(residual.reshape(mf, lanes))

    out = pl.pallas_call(
        kernel,
        grid_spec=pltpu.PrefetchScalarGridSpec(
            num_scalar_prefetch=0,
            grid=(nt,),
            in_specs=in_specs,
            out_specs=pl.BlockSpec((tm, lanes), lambda i: (i, 0)),
        ),
        out_shape=jax.ShapeDtypeStruct((mf, lanes), jnp.float32),
        compiler_params=pltpu.CompilerParams(
            dimension_semantics=("parallel",),  # no cross-tile dependency
            vmem_limit_bytes=VMEM_LIMIT,
        ),
    )(*args)
    return out.reshape(m, c)


def _scale_relu_proj_add(y, scale, shift, xs, wp, bp, row_tile=ROW_TILE):
    """Block-0 conv2 epilogue: normalize + ReLU + fused 1x1 projection residual."""
    m, c = y.shape
    cin = xs.shape[1]
    ss = jnp.stack([scale, shift]).astype(jnp.float32)
    tm = _pick_tile(m, row_tile)
    nt = m // tm
    return pl.pallas_call(
        _scale_relu_proj_add_kernel,
        grid_spec=pltpu.PrefetchScalarGridSpec(
            num_scalar_prefetch=0,
            grid=(nt,),
            in_specs=[
                pl.BlockSpec((tm, c), lambda i: (i, 0)),    # y row tile
                pl.BlockSpec((2, c), lambda i: (0, 0)),     # folded scale/shift
                pl.BlockSpec((tm, cin), lambda i: (i, 0)),  # strided input rows (bf16)
                pl.BlockSpec((cin, c), lambda i: (0, 0)),   # projection weight (bf16)
                pl.BlockSpec((1, c), lambda i: (0, 0)),     # projection bias
            ],
            out_specs=pl.BlockSpec((tm, c), lambda i: (i, 0)),
        ),
        out_shape=jax.ShapeDtypeStruct((m, c), jnp.float32),
        compiler_params=pltpu.CompilerParams(
            dimension_semantics=("parallel",),
            vmem_limit_bytes=VMEM_LIMIT,
        ),
    )(y, ss, xs.astype(jnp.bfloat16), wp.astype(jnp.bfloat16), bp.astype(jnp.float32))


# ----------------------------------------------------------------------------
# Glue: im2col (XLA-side) + per-conv driver + full stack
# ----------------------------------------------------------------------------
def _im2col(x_nhwc, k, stride, pad):
    # TODO(synk): move im2col in-kernel (tap-indexed grid axis / manual DMA) so the
    # 9x patch matrix is never materialized in HBM.
    n, h, w, c = x_nhwc.shape
    xp = jnp.pad(x_nhwc, ((0, 0), (pad, pad), (pad, pad), (0, 0)))
    oh = (h + 2 * pad - k) // stride + 1
    ow = (w + 2 * pad - k) // stride + 1
    cols = []
    for kh in range(k):
        for kw in range(k):
            cols.append(
                xp[:, kh : kh + stride * oh : stride, kw : kw + stride * ow : stride, :]
            )
    patches = jnp.concatenate(cols, axis=-1)  # (N, OH, OW, k*k*C), (kh, kw, ci) order
    return patches.reshape(n * oh * ow, k * k * c), (n, oh, ow)


def _conv_bn_pass1(x_nhwc, params, stride, row_tile=ROW_TILE):
    """3x3 conv as im2col matmul (pass 1) + folded BN scale/shift (batch stats)."""
    patches, (n, oh, ow) = _im2col(x_nhwc.astype(jnp.bfloat16), 3, stride, 1)
    cout = params["w"].shape[-1]
    wmat = params["w"].reshape(-1, cout).astype(jnp.bfloat16)  # (3*3*Cin, Cout)
    y, s1, s2 = _matmul_stats(patches, wmat, row_tile)
    scale, shift = _bn_scale_shift(
        s1, s2, patches.shape[0], params["gamma"], params["beta"])
    return y, scale, shift, (n, oh, ow, cout)


def stack_layer_apply(x_nchw, params, strides, row_tile=ROW_TILE):
    x = jnp.transpose(x_nchw, (0, 2, 3, 1))  # NCHW -> NHWC, once at the boundary
    for i, blk in enumerate(params["blocks"]):
        stride = strides if i == 0 else 1
        # conv1: matmul+stats pass, then lane-dense normalize+relu pass
        y1, sc1, sh1, shp1 = _conv_bn_pass1(x, blk["conv1"], stride, row_tile)
        h = _scale_relu(y1, sc1, sh1, row_tile=row_tile).reshape(shp1)
        # TODO(synk): fuse conv1's normalize pass with conv2's matmul pass (and its
        # im2col) into one pallas_call so `h` never round-trips through HBM.
        # conv2: matmul+stats pass, then normalize+relu fused with the residual branch
        y2, sc2, sh2, shp2 = _conv_bn_pass1(h, blk["conv2"], 1, row_tile)
        n, oh, ow, cout = shp2
        if i == 0:
            # 1x1 stride-s projection fused into the final element-wise pass.
            # TODO(synk): fold the strided slice into a strided BlockSpec/DMA instead
            # of materializing the sliced copy in XLA.
            xs = x[:, ::stride, ::stride, :].reshape(n * oh * ow, -1)
            out2 = _scale_relu_proj_add(
                y2, sc2, sh2, xs, blk["proj"]["w"], blk["proj"]["b"], row_tile)
        else:
            out2 = _scale_relu(
                y2, sc2, sh2, residual=x.reshape(n * oh * ow, cout), row_tile=row_tile)
        x = out2.reshape(shp2)
    return jnp.transpose(x, (0, 3, 1, 2))  # NHWC -> NCHW


# ----------------------------------------------------------------------------
# Deterministic parameter init (mirrors the module's __init__ shapes)
# ----------------------------------------------------------------------------
def _init_conv_block(key, cin, cout, k=3):
    kw_, kb_ = jax.random.split(key)
    fan_in = cin * k * k
    std = (2.0 / fan_in) ** 0.5  # kaiming_normal_
    w = std * jax.random.normal(kw_, (k, k, cin, cout), dtype=jnp.float32)
    bound = 1.0 / fan_in ** 0.5
    # NOTE: the conv bias is kept for module fidelity but is mathematically
    # cancelled by training-mode BN, so the kernels never read it.
    b = jax.random.uniform(kb_, (1, cout), jnp.float32, -bound, bound)
    return {
        "w": w,
        "b": b,
        "gamma": jnp.ones((1, cout), jnp.float32),
        "beta": jnp.zeros((1, cout), jnp.float32),
    }


def init_stack_layer(key, block_size, in_filters, out_filters):
    blocks = []
    cin = in_filters
    for i in range(block_size):
        key, k1, k2, k3, k4 = jax.random.split(key, 5)
        blk = {
            "conv1": _init_conv_block(k1, cin, out_filters),
            "conv2": _init_conv_block(k2, out_filters, out_filters),
        }
        if i == 0:
            bound = 1.0 / cin ** 0.5
            blk["proj"] = {
                "w": bound * jax.random.normal(k3, (cin, out_filters), jnp.float32),
                "b": jax.random.uniform(k4, (1, out_filters), jnp.float32, -bound, bound),
            }
        blocks.append(blk)
        cin = out_filters
    return {"blocks": blocks}


# ----------------------------------------------------------------------------
# Pure-JAX f32 reference (module semantics) for the correctness check
# ----------------------------------------------------------------------------
def _ref_conv_block(x, p, stride):
    y = jax.lax.conv_general_dilated(
        x, p["w"], (stride, stride), ((1, 1), (1, 1)),
        dimension_numbers=("NHWC", "HWIO", "NHWC"),
    ) + p["b"].reshape(1, 1, 1, -1)
    mean = y.mean(axis=(0, 1, 2))
    var = y.var(axis=(0, 1, 2))
    yh = (y - mean) * jax.lax.rsqrt(var + EPS)
    return jnp.maximum(yh * p["gamma"].reshape(-1) + p["beta"].reshape(-1), 0.0)


def _ref_stack(x_nchw, params, strides):
    x = jnp.transpose(x_nchw, (0, 2, 3, 1))
    for i, blk in enumerate(params["blocks"]):
        stride = strides if i == 0 else 1
        if i == 0:
            xs = x[:, ::stride, ::stride, :]
            resid = (jnp.einsum("nhwc,cd->nhwd", xs, blk["proj"]["w"])
                     + blk["proj"]["b"].reshape(-1))
        else:
            resid = x
        h = _ref_conv_block(x, blk["conv1"], stride)
        x = _ref_conv_block(h, blk["conv2"], 1) + resid
    return jnp.transpose(x, (0, 3, 1, 2))


# ----------------------------------------------------------------------------
if __name__ == "__main__":
    key = jax.random.PRNGKey(0)
    kx, kp = jax.random.split(key)

    # stack_layer(block_size=2, in_filters=4, out_filters=8, strides=2)
    block_size, in_filters, out_filters, strides = 2, 4, 8, 2
    # N*OH*OW = 2*16*16 = 512 rows -> multi-step row grids at ROW_TILE=256
    N, H, W = 2, 32, 32

    x = jax.random.normal(kx, (N, in_filters, H, W), dtype=jnp.float32)  # NCHW input
    params = init_stack_layer(kp, block_size, in_filters, out_filters)

    fwd = jax.jit(lambda xx, pp: stack_layer_apply(xx, pp, strides))
    out = jax.block_until_ready(fwd(x, params))
    assert out.shape == (N, out_filters, H // strides, W // strides), out.shape

    ref = jax.block_until_ready(_ref_stack(x, params, strides))
    # bf16 MXU operands (f32 accumulation / BN math) -> mixed-precision tolerance.
    rel = float(jnp.linalg.norm(out - ref) / jnp.linalg.norm(ref))
    max_abs = float(jnp.max(jnp.abs(out - ref)))
    assert rel < 5e-2, (rel, max_abs)
    assert max_abs < 3e-1, (rel, max_abs)

    print("KERNEL_OK")
</pallas_src>

<mosaic_0001>
module attributes {stable_mosaic.version = 11 : i64} {
  func.func @_matmul_stats_kernel(%arg0: i32, %arg1: memref<256x36xbf16, #tpu.memory_space<vmem>>, %arg2: memref<36x8xbf16, #tpu.memory_space<vmem>>, %arg3: memref<256x8xf32, #tpu.memory_space<vmem>>, %arg4: memref<8x8xf32, #tpu.memory_space<vmem>>, %arg5: memref<8x8xf32, #tpu.memory_space<vmem>>) attributes {dimension_semantics = [#tpu.dimension_semantics<arbitrary>], iteration_bounds = array<i64: 2>, scalar_prefetch = 0 : i64, scratch_operands = 0 : i64, tpu.core_type = #tpu.core_type<tc>, window_params = [{transform_indices = @transform_0, window_bounds = array<i64: 256, 36>}, {pipeline_mode = #tpu.pipeline_mode<synchronous>, transform_indices = @transform_1, window_bounds = array<i64: 36, 8>}, {transform_indices = @transform_2, window_bounds = array<i64: 256, 8>}, {pipeline_mode = #tpu.pipeline_mode<synchronous>, transform_indices = @transform_3, window_bounds = array<i64: 8, 8>}, {pipeline_mode = #tpu.pipeline_mode<synchronous>, transform_indices = @transform_4, window_bounds = array<i64: 8, 8>}]} {
    %c0_i32 = arith.constant 0 : i32
    %0 = arith.cmpi eq, %arg0, %c0_i32 : i32
    %1 = arith.extui %0 : i1 to i32
    %c0_i32_0 = arith.constant 0 : i32
    %2 = arith.cmpi ne, %1, %c0_i32_0 : i32
    scf.if %2 {
      %cst_16 = arith.constant 0.000000e+00 : f32
      %20 = vector.broadcast %cst_16 : f32 to vector<8x8xf32>
      %c0_17 = arith.constant 0 : index
      %c0_18 = arith.constant 0 : index
      %21 = vector.load %arg4[%c0_17, %c0_18] : memref<8x8xf32, #tpu.memory_space<vmem>>, vector<8x8xf32>
      tpu.vector_store %arg4[%c0_17, %c0_18], %20 {strides = array<i32>} : memref<8x8xf32, #tpu.memory_space<vmem>>, vector<8x8xf32>,
      %cst_19 = arith.constant 0.000000e+00 : f32
      %22 = vector.broadcast %cst_19 : f32 to vector<8x8xf32>
      %c0_20 = arith.constant 0 : index
      %c0_21 = arith.constant 0 : index
      %23 = vector.load %arg5[%c0_20, %c0_21] : memref<8x8xf32, #tpu.memory_space<vmem>>, vector<8x8xf32>
      tpu.vector_store %arg5[%c0_20, %c0_21], %22 {strides = array<i32>} : memref<8x8xf32, #tpu.memory_space<vmem>>, vector<8x8xf32>,
    } else {
    }
    %c0 = arith.constant 0 : index
    %c0_1 = arith.constant 0 : index
    %3 = vector.load %arg1[%c0, %c0_1] : memref<256x36xbf16, #tpu.memory_space<vmem>>, vector<256x36xbf16>
    %c0_2 = arith.constant 0 : index
    %c0_3 = arith.constant 0 : index
    %4 = vector.load %arg2[%c0_2, %c0_3] : memref<36x8xbf16, #tpu.memory_space<vmem>>, vector<36x8xbf16>
    %cst = arith.constant dense<0.000000e+00> : vector<256x8xf32>
    %5 = tpu.matmul %3, %4, %cst {dimension_numbers = #tpu.dot_dimension_numbers<[1], [0], [0], [1], [0, 0, 1, 1], [], []>} : vector<256x36xbf16>, vector<36x8xbf16>, vector<256x8xf32> -> vector<256x8xf32>
    %c0_4 = arith.constant 0 : index
    %c0_5 = arith.constant 0 : index
    %6 = vector.load %arg3[%c0_4, %c0_5] : memref<256x8xf32, #tpu.memory_space<vmem>>, vector<256x8xf32>
    tpu.vector_store %arg3[%c0_4, %c0_5], %5 {strides = array<i32>} : memref<256x8xf32, #tpu.memory_space<vmem>>, vector<256x8xf32>,
    %c0_6 = arith.constant 0 : index
    %c0_7 = arith.constant 0 : index
    %7 = vector.load %arg4[%c0_6, %c0_7] : memref<8x8xf32, #tpu.memory_space<vmem>>, vector<8x8xf32>
    %cst_8 = arith.constant dense<0.000000e+00> : vector<8xf32>
    %8 = vector.multi_reduction <add>, %5, %cst_8 [0] : vector<256x8xf32> to vector<8xf32>
    %9 = vector.shape_cast %8 : vector<8xf32> to vector<1x8xf32>
    %10 = vector.broadcast %9 : vector<1x8xf32> to vector<8x8xf32>
    %11 = arith.addf %7, %10 : vector<8x8xf32>
    %c0_9 = arith.constant 0 : index
    %c0_10 = arith.constant 0 : index
    %12 = vector.load %arg4[%c0_9, %c0_10] : memref<8x8xf32, #tpu.memory_space<vmem>>, vector<8x8xf32>
    tpu.vector_store %arg4[%c0_9, %c0_10], %11 {strides = array<i32>} : memref<8x8xf32, #tpu.memory_space<vmem>>, vector<8x8xf32>,
    %c0_11 = arith.constant 0 : index
    %c0_12 = arith.constant 0 : index
    %13 = vector.load %arg5[%c0_11, %c0_12] : memref<8x8xf32, #tpu.memory_space<vmem>>, vector<8x8xf32>
    %14 = arith.mulf %5, %5 : vector<256x8xf32>
    %cst_13 = arith.constant dense<0.000000e+00> : vector<8xf32>
    %15 = vector.multi_reduction <add>, %14, %cst_13 [0] : vector<256x8xf32> to vector<8xf32>
    %16 = vector.shape_cast %15 : vector<8xf32> to vector<1x8xf32>
    %17 = vector.broadcast %16 : vector<1x8xf32> to vector<8x8xf32>
    %18 = arith.addf %13, %17 : vector<8x8xf32>
    %c0_14 = arith.constant 0 : index
    %c0_15 = arith.constant 0 : index
    %19 = vector.load %arg5[%c0_14, %c0_15] : memref<8x8xf32, #tpu.memory_space<vmem>>, vector<8x8xf32>
    tpu.vector_store %arg5[%c0_14, %c0_15], %18 {strides = array<i32>} : memref<8x8xf32, #tpu.memory_space<vmem>>, vector<8x8xf32>,
    return
  }
  func.func @transform_0(%arg0: i32) -> (i32, i32) {
    %c0_i32 = arith.constant 0 : i32
    %c0_i32_0 = arith.constant 0 : i32
    return %arg0, %c0_i32 : i32, i32
  }
  func.func @transform_1(%arg0: i32) -> (i32, i32) {
    %c0_i32 = arith.constant 0 : i32
    %c0_i32_0 = arith.constant 0 : i32
    %c0_i32_1 = arith.constant 0 : i32
    return %c0_i32, %c0_i32_0 : i32, i32
  }
  func.func @transform_2(%arg0: i32) -> (i32, i32) {
    %c0_i32 = arith.constant 0 : i32
    %c0_i32_0 = arith.constant 0 : i32
    return %arg0, %c0_i32 : i32, i32
  }
  func.func @transform_3(%arg0: i32) -> (i32, i32) {
    %c0_i32 = arith.constant 0 : i32
    %c0_i32_0 = arith.constant 0 : i32
    %c0_i32_1 = arith.constant 0 : i32
    return %c0_i32, %c0_i32_0 : i32, i32
  }
  func.func @transform_4(%arg0: i32) -> (i32, i32) {
    %c0_i32 = arith.constant 0 : i32
    %c0_i32_0 = arith.constant 0 : i32
    %c0_i32_1 = arith.constant 0 : i32
    return %c0_i32, %c0_i32_0 : i32, i32
  }
}

module attributes {stable_mosaic.version = 11 : i64} {
  func.func @_scale_relu_kernel(%arg0: i32, %arg1: memref<32x128xf32, #tpu.memory_space<vmem>>, %arg2: memref<2x128xf32, #tpu.memory_space<vmem>>, %arg3: memref<32x128xf32, #tpu.memory_space<vmem>>) attributes {dimension_semantics = [#tpu.dimension_semantics<parallel>], iteration_bounds = array<i64: 1>, scalar_prefetch = 0 : i64, scratch_operands = 0 : i64, tpu.core_type = #tpu.core_type<tc>, window_params = [{transform_indices = @transform_0, window_bounds = array<i64: 32, 128>}, {pipeline_mode = #tpu.pipeline_mode<synchronous>, transform_indices = @transform_1, window_bounds = array<i64: 2, 128>}, {transform_indices = @transform_2, window_bounds = array<i64: 32, 128>}]} {
    %c0 = arith.constant 0 : index
    %c0_0 = arith.constant 0 : index
    %0 = vector.load %arg1[%c0, %c0_0] : memref<32x128xf32, #tpu.memory_space<vmem>>, vector<32x128xf32>
    %c0_1 = arith.constant 0 : index
    %c0_2 = arith.constant 0 : index
    %1 = vector.load %arg2[%c0_1, %c0_2] : memref<2x128xf32, #tpu.memory_space<vmem>>, vector<1x128xf32>
    %2 = vector.broadcast %1 : vector<1x128xf32> to vector<32x128xf32>
    %3 = arith.mulf %0, %2 : vector<32x128xf32>
    %c1 = arith.constant 1 : index
    %c0_3 = arith.constant 0 : index
    %4 = vector.load %arg2[%c1, %c0_3] : memref<2x128xf32, #tpu.memory_space<vmem>>, vector<1x128xf32>
    %5 = vector.broadcast %4 : vector<1x128xf32> to vector<32x128xf32>
    %6 = arith.addf %3, %5 : vector<32x128xf32>
    %cst = arith.constant 0.000000e+00 : f32
    %7 = vector.broadcast %cst : f32 to vector<32x128xf32>
    %8 = arith.maximumf %6, %7 : vector<32x128xf32>
    %c0_4 = arith.constant 0 : index
    %c0_5 = arith.constant 0 : index
    %9 = vector.load %arg3[%c0_4, %c0_5] : memref<32x128xf32, #tpu.memory_space<vmem>>, vector<32x128xf32>
    tpu.vector_store %arg3[%c0_4, %c0_5], %8 {strides = array<i32>} : memref<32x128xf32, #tpu.memory_space<vmem>>, vector<32x128xf32>,
    return
  }
  func.func @transform_0(%arg0: i32) -> (i32, i32) {
    %c0_i32 = arith.constant 0 : i32
    %c0_i32_0 = arith.constant 0 : i32
    return %arg0, %c0_i32 : i32, i32
  }
  func.func @transform_1(%arg0: i32) -> (i32, i32) {
    %c0_i32 = arith.constant 0 : i32
    %c0_i32_0 = arith.constant 0 : i32
    %c0_i32_1 = arith.constant 0 : i32
    return %c0_i32, %c0_i32_0 : i32, i32
  }
  func.func @transform_2(%arg0: i32) -> (i32, i32) {
    %c0_i32 = arith.constant 0 : i32
    %c0_i32_0 = arith.constant 0 : i32
    return %arg0, %c0_i32 : i32, i32
  }
}

module attributes {stable_mosaic.version = 11 : i64} {
  func.func @_matmul_stats_kernel(%arg0: i32, %arg1: memref<256x72xbf16, #tpu.memory_space<vmem>>, %arg2: memref<72x8xbf16, #tpu.memory_space<vmem>>, %arg3: memref<256x8xf32, #tpu.memory_space<vmem>>, %arg4: memref<8x8xf32, #tpu.memory_space<vmem>>, %arg5: memref<8x8xf32, #tpu.memory_space<vmem>>) attributes {dimension_semantics = [#tpu.dimension_semantics<arbitrary>], iteration_bounds = array<i64: 2>, scalar_prefetch = 0 : i64, scratch_operands = 0 : i64, tpu.core_type = #tpu.core_type<tc>, window_params = [{transform_indices = @transform_0, window_bounds = array<i64: 256, 72>}, {pipeline_mode = #tpu.pipeline_mode<synchronous>, transform_indices = @transform_1, window_bounds = array<i64: 72, 8>}, {transform_indices = @transform_2, window_bounds = array<i64: 256, 8>}, {pipeline_mode = #tpu.pipeline_mode<synchronous>, transform_indices = @transform_3, window_bounds = array<i64: 8, 8>}, {pipeline_mode = #tpu.pipeline_mode<synchronous>, transform_indices = @transform_4, window_bounds = array<i64: 8, 8>}]} {
    %c0_i32 = arith.constant 0 : i32
    %0 = arith.cmpi eq, %arg0, %c0_i32 : i32
    %1 = arith.extui %0 : i1 to i32
    %c0_i32_0 = arith.constant 0 : i32
    %2 = arith.cmpi ne, %1, %c0_i32_0 : i32
    scf.if %2 {
      %cst_16 = arith.constant 0.000000e+00 : f32
      %20 = vector.broadcast %cst_16 : f32 to vector<8x8xf32>
      %c0_17 = arith.constant 0 : index
      %c0_18 = arith.constant 0 : index
      %21 = vector.load %arg4[%c0_17, %c0_18] : memref<8x8xf32, #tpu.memory_space<vmem>>, vector<8x8xf32>
      tpu.vector_store %arg4[%c0_17, %c0_18], %20 {strides = array<i32>} : memref<8x8xf32, #tpu.memory_space<vmem>>, vector<8x8xf32>,
      %cst_19 = arith.constant 0.000000e+00 : f32
      %22 = vector.broadcast %cst_19 : f32 to vector<8x8xf32>
      %c0_20 = arith.constant 0 : index
      %c0_21 = arith.constant 0 : index
      %23 = vector.load %arg5[%c0_20, %c0_21] : memref<8x8xf32, #tpu.memory_space<vmem>>, vector<8x8xf32>
      tpu.vector_store %arg5[%c0_20, %c0_21], %22 {strides = array<i32>} : memref<8x8xf32, #tpu.memory_space<vmem>>, vector<8x8xf32>,
    } else {
    }
    %c0 = arith.constant 0 : index
    %c0_1 = arith.constant 0 : index
    %3 = vector.load %arg1[%c0, %c0_1] : memref<256x72xbf16, #tpu.memory_space<vmem>>, vector<256x72xbf16>
    %c0_2 = arith.constant 0 : index
    %c0_3 = arith.constant 0 : index
    %4 = vector.load %arg2[%c0_2, %c0_3] : memref<72x8xbf16, #tpu.memory_space<vmem>>, vector<72x8xbf16>
    %cst = arith.constant dense<0.000000e+00> : vector<256x8xf32>
    %5 = tpu.matmul %3, %4, %cst {dimension_numbers = #tpu.dot_dimension_numbers<[1], [0], [0], [1], [0, 0, 1, 1], [], []>} : vector<256x72xbf16>, vector<72x8xbf16>, vector<256x8xf32> -> vector<256x8xf32>
    %c0_4 = arith.constant 0 : index
    %c0_5 = arith.constant 0 : index
    %6 = vector.load %arg3[%c0_4, %c0_5] : memref<256x8xf32, #tpu.memory_space<vmem>>, vector<256x8xf32>
    tpu.vector_store %arg3[%c0_4, %c0_5], %5 {strides = array<i32>} : memref<256x8xf32, #tpu.memory_space<vmem>>, vector<256x8xf32>,
    %c0_6 = arith.constant 0 : index
    %c0_7 = arith.constant 0 : index
    %7 = vector.load %arg4[%c0_6, %c0_7] : memref<8x8xf32, #tpu.memory_space<vmem>>, vector<8x8xf32>
    %cst_8 = arith.constant dense<0.000000e+00> : vector<8xf32>
    %8 = vector.multi_reduction <add>, %5, %cst_8 [0] : vector<256x8xf32> to vector<8xf32>
    %9 = vector.shape_cast %8 : vector<8xf32> to vector<1x8xf32>
    %10 = vector.broadcast %9 : vector<1x8xf32> to vector<8x8xf32>
    %11 = arith.addf %7, %10 : vector<8x8xf32>
    %c0_9 = arith.constant 0 : index
    %c0_10 = arith.constant 0 : index
    %12 = vector.load %arg4[%c0_9, %c0_10] : memref<8x8xf32, #tpu.memory_space<vmem>>, vector<8x8xf32>
    tpu.vector_store %arg4[%c0_9, %c0_10], %11 {strides = array<i32>} : memref<8x8xf32, #tpu.memory_space<vmem>>, vector<8x8xf32>,
    %c0_11 = arith.constant 0 : index
    %c0_12 = arith.constant 0 : index
    %13 = vector.load %arg5[%c0_11, %c0_12] : memref<8x8xf32, #tpu.memory_space<vmem>>, vector<8x8xf32>
    %14 = arith.mulf %5, %5 : vector<256x8xf32>
    %cst_13 = arith.constant dense<0.000000e+00> : vector<8xf32>
    %15 = vector.multi_reduction <add>, %14, %cst_13 [0] : vector<256x8xf32> to vector<8xf32>
    %16 = vector.shape_cast %15 : vector<8xf32> to vector<1x8xf32>
    %17 = vector.broadcast %16 : vector<1x8xf32> to vector<8x8xf32>
    %18 = arith.addf %13, %17 : vector<8x8xf32>
    %c0_14 = arith.constant 0 : index
    %c0_15 = arith.constant 0 : index
    %19 = vector.load %arg5[%c0_14, %c0_15] : memref<8x8xf32, #tpu.memory_space<vmem>>, vector<8x8xf32>
    tpu.vector_store %arg5[%c0_14, %c0_15], %18 {strides = array<i32>} : memref<8x8xf32, #tpu.memory_space<vmem>>, vector<8x8xf32>,
    return
  }
  func.func @transform_0(%arg0: i32) -> (i32, i32) {
    %c0_i32 = arith.constant 0 : i32
    %c0_i32_0 = arith.constant 0 : i32
    return %arg0, %c0_i32 : i32, i32
  }
  func.func @transform_1(%arg0: i32) -> (i32, i32) {
    %c0_i32 = arith.constant 0 : i32
    %c0_i32_0 = arith.constant 0 : i32
    %c0_i32_1 = arith.constant 0 : i32
    return %c0_i32, %c0_i32_0 : i32, i32
  }
  func.func @transform_2(%arg0: i32) -> (i32, i32) {
    %c0_i32 = arith.constant 0 : i32
    %c0_i32_0 = arith.constant 0 : i32
    return %arg0, %c0_i32 : i32, i32
  }
  func.func @transform_3(%arg0: i32) -> (i32, i32) {
    %c0_i32 = arith.constant 0 : i32
    %c0_i32_0 = arith.constant 0 : i32
    %c0_i32_1 = arith.constant 0 : i32
    return %c0_i32, %c0_i32_0 : i32, i32
  }
  func.func @transform_4(%arg0: i32) -> (i32, i32) {
    %c0_i32 = arith.constant 0 : i32
    %c0_i32_0 = arith.constant 0 : i32
    %c0_i32_1 = arith.constant 0 : i32
    return %c0_i32, %c0_i32_0 : i32, i32
  }
}

module attributes {stable_mosaic.version = 11 : i64} {
  func.func @_scale_relu_proj_add_kernel(%arg0: i32, %arg1: memref<256x8xf32, #tpu.memory_space<vmem>>, %arg2: memref<2x8xf32, #tpu.memory_space<vmem>>, %arg3: memref<256x4xbf16, #tpu.memory_space<vmem>>, %arg4: memref<4x8xbf16, #tpu.memory_space<vmem>>, %arg5: memref<1x8xf32, #tpu.memory_space<vmem>>, %arg6: memref<256x8xf32, #tpu.memory_space<vmem>>) attributes {dimension_semantics = [#tpu.dimension_semantics<parallel>], iteration_bounds = array<i64: 2>, scalar_prefetch = 0 : i64, scratch_operands = 0 : i64, tpu.core_type = #tpu.core_type<tc>, window_params = [{transform_indices = @transform_0, window_bounds = array<i64: 256, 8>}, {pipeline_mode = #tpu.pipeline_mode<synchronous>, transform_indices = @transform_1, window_bounds = array<i64: 2, 8>}, {transform_indices = @transform_2, window_bounds = array<i64: 256, 4>}, {pipeline_mode = #tpu.pipeline_mode<synchronous>, transform_indices = @transform_3, window_bounds = array<i64: 4, 8>}, {pipeline_mode = #tpu.pipeline_mode<synchronous>, transform_indices = @transform_4, window_bounds = array<i64: 1, 8>}, {transform_indices = @transform_5, window_bounds = array<i64: 256, 8>}]} {
    %c0 = arith.constant 0 : index
    %c0_0 = arith.constant 0 : index
    %0 = vector.load %arg1[%c0, %c0_0] : memref<256x8xf32, #tpu.memory_space<vmem>>, vector<256x8xf32>
    %c0_1 = arith.constant 0 : index
    %c0_2 = arith.constant 0 : index
    %1 = vector.load %arg2[%c0_1, %c0_2] : memref<2x8xf32, #tpu.memory_space<vmem>>, vector<1x8xf32>
    %2 = vector.broadcast %1 : vector<1x8xf32> to vector<256x8xf32>
    %3 = arith.mulf %0, %2 : vector<256x8xf32>
    %c1 = arith.constant 1 : index
    %c0_3 = arith.constant 0 : index
    %4 = vector.load %arg2[%c1, %c0_3] : memref<2x8xf32, #tpu.memory_space<vmem>>, vector<1x8xf32>
    %5 = vector.broadcast %4 : vector<1x8xf32> to vector<256x8xf32>
    %6 = arith.addf %3, %5 : vector<256x8xf32>
    %cst = arith.constant 0.000000e+00 : f32
    %7 = vector.broadcast %cst : f32 to vector<256x8xf32>
    %8 = arith.maximumf %6, %7 : vector<256x8xf32>
    %c0_4 = arith.constant 0 : index
    %c0_5 = arith.constant 0 : index
    %9 = vector.load %arg3[%c0_4, %c0_5] : memref<256x4xbf16, #tpu.memory_space<vmem>>, vector<256x4xbf16>
    %c0_6 = arith.constant 0 : index
    %c0_7 = arith.constant 0 : index
    %10 = vector.load %arg4[%c0_6, %c0_7] : memref<4x8xbf16, #tpu.memory_space<vmem>>, vector<4x8xbf16>
    %cst_8 = arith.constant dense<0.000000e+00> : vector<256x8xf32>
    %11 = tpu.matmul %9, %10, %cst_8 {dimension_numbers = #tpu.dot_dimension_numbers<[1], [0], [0], [1], [0, 0, 1, 1], [], []>} : vector<256x4xbf16>, vector<4x8xbf16>, vector<256x8xf32> -> vector<256x8xf32>
    %12 = arith.addf %8, %11 : vector<256x8xf32>
    %c0_9 = arith.constant 0 : index
    %c0_10 = arith.constant 0 : index
    %13 = vector.load %arg5[%c0_9, %c0_10] : memref<1x8xf32, #tpu.memory_space<vmem>>, vector<1x8xf32>
    %14 = vector.broadcast %13 : vector<1x8xf32> to vector<256x8xf32>
    %15 = arith.addf %12, %14 : vector<256x8xf32>
    %c0_11 = arith.constant 0 : index
    %c0_12 = arith.constant 0 : index
    %16 = vector.load %arg6[%c0_11, %c0_12] : memref<256x8xf32, #tpu.memory_space<vmem>>, vector<256x8xf32>
    tpu.vector_store %arg6[%c0_11, %c0_12], %15 {strides = array<i32>} : memref<256x8xf32, #tpu.memory_space<vmem>>, vector<256x8xf32>,
    return
  }
  func.func @transform_0(%arg0: i32) -> (i32, i32) {
    %c0_i32 = arith.constant 0 : i32
    %c0_i32_0 = arith.constant 0 : i32
    return %arg0, %c0_i32 : i32, i32
  }
  func.func @transform_1(%arg0: i32) -> (i32, i32) {
    %c0_i32 = arith.constant 0 : i32
    %c0_i32_0 = arith.constant 0 : i32
    %c0_i32_1 = arith.constant 0 : i32
    return %c0_i32, %c0_i32_0 : i32, i32
  }
  func.func @transform_2(%arg0: i32) -> (i32, i32) {
    %c0_i32 = arith.constant 0 : i32
    %c0_i32_0 = arith.constant 0 : i32
    return %arg0, %c0_i32 : i32, i32
  }
  func.func @transform_3(%arg0: i32) -> (i32, i32) {
    %c0_i32 = arith.constant 0 : i32
    %c0_i32_0 = arith.constant 0 : i32
    %c0_i32_1 = arith.constant 0 : i32
    return %c0_i32, %c0_i32_0 : i32, i32
  }
  func.func @transform_4(%arg0: i32) -> (i32, i32) {
    %c0_i32 = arith.constant 0 : i32
    %c0_i32_0 = arith.constant 0 : i32
    %c0_i32_1 = arith.constant 0 : i32
    return %c0_i32, %c0_i32_0 : i32, i32
  }
  func.func @transform_5(%arg0: i32) -> (i32, i32) {
    %c0_i32 = arith.constant 0 : i32
    %c0_i32_0 = arith.constant 0 : i32
    return %arg0, %c0_i32 : i32, i32
  }
}

module attributes {stable_mosaic.version = 11 : i64} {
  func.func @_scale_relu_add_kernel(%arg0: i32, %arg1: memref<32x128xf32, #tpu.memory_space<vmem>>, %arg2: memref<2x128xf32, #tpu.memory_space<vmem>>, %arg3: memref<32x128xf32, #tpu.memory_space<vmem>>, %arg4: memref<32x128xf32, #tpu.memory_space<vmem>>) attributes {dimension_semantics = [#tpu.dimension_semantics<parallel>], iteration_bounds = array<i64: 1>, scalar_prefetch = 0 : i64, scratch_operands = 0 : i64, tpu.core_type = #tpu.core_type<tc>, window_params = [{transform_indices = @transform_0, window_bounds = array<i64: 32, 128>}, {pipeline_mode = #tpu.pipeline_mode<synchronous>, transform_indices = @transform_1, window_bounds = array<i64: 2, 128>}, {transform_indices = @transform_2, window_bounds = array<i64: 32, 128>}, {transform_indices = @transform_3, window_bounds = array<i64: 32, 128>}]} {
    %c0 = arith.constant 0 : index
    %c0_0 = arith.constant 0 : index
    %0 = vector.load %arg1[%c0, %c0_0] : memref<32x128xf32, #tpu.memory_space<vmem>>, vector<32x128xf32>
    %c0_1 = arith.constant 0 : index
    %c0_2 = arith.constant 0 : index
    %1 = vector.load %arg2[%c0_1, %c0_2] : memref<2x128xf32, #tpu.memory_space<vmem>>, vector<1x128xf32>
    %2 = vector.broadcast %1 : vector<1x128xf32> to vector<32x128xf32>
    %3 = arith.mulf %0, %2 : vector<32x128xf32>
    %c1 = arith.constant 1 : index
    %c0_3 = arith.constant 0 : index
    %4 = vector.load %arg2[%c1, %c0_3] : memref<2x128xf32, #tpu.memory_space<vmem>>, vector<1x128xf32>
    %5 = vector.broadcast %4 : vector<1x128xf32> to vector<32x128xf32>
    %6 = arith.addf %3, %5 : vector<32x128xf32>
    %cst = arith.constant 0.000000e+00 : f32
    %7 = vector.broadcast %cst : f32 to vector<32x128xf32>
    %8 = arith.maximumf %6, %7 : vector<32x128xf32>
    %c0_4 = arith.constant 0 : index
    %c0_5 = arith.constant 0 : index
    %9 = vector.load %arg3[%c0_4, %c0_5] : memref<32x128xf32, #tpu.memory_space<vmem>>, vector<32x128xf32>
    %10 = arith.addf %8, %9 : vector<32x128xf32>
    %c0_6 = arith.constant 0 : index
    %c0_7 = arith.constant 0 : index
    %11 = vector.load %arg4[%c0_6, %c0_7] : memref<32x128xf32, #tpu.memory_space<vmem>>, vector<32x128xf32>
    tpu.vector_store %arg4[%c0_6, %c0_7], %10 {strides = array<i32>} : memref<32x128xf32, #tpu.memory_space<vmem>>, vector<32x128xf32>,
    return
  }
  func.func @transform_0(%arg0: i32) -> (i32, i32) {
    %c0_i32 = arith.constant 0 : i32
    %c0_i32_0 = arith.constant 0 : i32
    return %arg0, %c0_i32 : i32, i32
  }
  func.func @transform_1(%arg0: i32) -> (i32, i32) {
    %c0_i32 = arith.constant 0 : i32
    %c0_i32_0 = arith.constant 0 : i32
    %c0_i32_1 = arith.constant 0 : i32
    return %c0_i32, %c0_i32_0 : i32, i32
  }
  func.func @transform_2(%arg0: i32) -> (i32, i32) {
    %c0_i32 = arith.constant 0 : i32
    %c0_i32_0 = arith.constant 0 : i32
    return %arg0, %c0_i32 : i32, i32
  }
  func.func @transform_3(%arg0: i32) -> (i32, i32) {
    %c0_i32 = arith.constant 0 : i32
    %c0_i32_0 = arith.constant 0 : i32
    return %arg0, %c0_i32 : i32, i32
  }
}

</mosaic_0001>

<llo_original>
// kernel: tile.33
$region0: #{tile.33}
  #allocation0 [shape = 's32[1]{0}', space=sflag, size = 0x4, scoped, tag = 'scoped memory for tile.33']
  %s0 = inlined_call_operand.vmem [shape: f32[8], index: 0, kind: input, shape index: {}]
  %s1 = inlined_call_operand.vmem [shape: f32[16,8], index: 1, kind: output, shape index: {}]
  // Predicated region
  $region2: #{tile.33} parent=0 // pred_check
    _
  $region3: #{tile.33} parent=0 // pred_check_branch
    %3 = sbr.rel (0) target = $region5
  $region4: #{tile.33} parent=0 // pred_region
    _
  $region5: #{tile.33} parent=0 // pred_fallthru
    _
  %v4 = vld [vmem:[%s0] ss:$0 sm:$0xff]
  %5 = vst [vmem:[%s1] sm:$0xff] %v4
  %s6 = scalar_lea.vmem %s1, 8
  %7 = vst [vmem:[%s6] sm:$0xff] %v4

// kernel: tile.38
$region0: #{tile.38}
  %s0 = inlined_call_operand.vmem [shape: f32[16,8], index: 0, kind: input, shape index: {}]
  %s1 = inlined_call_operand.vmem [shape: f32[1,128], index: 1, kind: output, shape index: {}]
  $region1: #{tile.38} parent=0
    #allocation0 [shape = 'u8[4096]{0}', space=vmem, size = 0x1000, scoped, tag = 'scoped mem for output reshape']
    %v2 = vld [vmem:[%s0] sm:$0x1]
    %vm3 = vcmask 64512
    %4 = vst.msk [vmem:[#allocation0] sm:$0x1] %vm3, %v2
    %s5 = scalar_lea.vmem %s0, 15
    %v6 = vld [vmem:[%s5] sm:$0x1]
    %7 = vrot.lane.b32.xlu0 %v6, 120
    %v8 = vpop.permute.xlu0 %7
    %vm9 = vcmask 1048512
    %10 = vst.msk [vmem:[#allocation0] sm:$0x1] %vm9, %v8
    %s11 = scalar_lea.vmem %s0, 14
    %v12 = vld [vmem:[%s11] sm:$0x1]
    %13 = vrot.lane.b32.xlu0 %v12, 112
    %v14 = vpop.permute.xlu0 %13
    %vm15 = vcmask 982912
    %16 = vst.msk [vmem:[#allocation0] sm:$0x1] %vm15, %v14
    %s17 = scalar_lea.vmem %s0, 13
    %v18 = vld [vmem:[%s17] sm:$0x1]
    %19 = vrot.lane.b32.xlu0 %v18, 104
    %v20 = vpop.permute.xlu0 %19
    %vm21 = vcmask 917312
    %22 = vst.msk [vmem:[#allocation0] sm:$0x1] %vm21, %v20
    %s23 = scalar_lea.vmem %s0, 12
    %v24 = vld [vmem:[%s23] sm:$0x1]
    %25 = vrot.lane.b32.xlu0 %v24, 96
    %v26 = vpop.permute.xlu0 %25
    %vm27 = vcmask 851712
    %28 = vst.msk [vmem:[#allocation0] sm:$0x1] %vm27, %v26
    %s29 = scalar_lea.vmem %s0, 11
    %v30 = vld [vmem:[%s29] sm:$0x1]
    %31 = vrot.lane.b32.xlu0 %v30, 88
    %v32 = vpop.permute.xlu0 %31
    %vm33 = vcmask 786112
    %34 = vst.msk [vmem:[#allocation0] sm:$0x1] %vm33, %v32
    %s35 = scalar_lea.vmem %s0, 10
    %v36 = vld [vmem:[%s35] sm:$0x1]
    %37 = vrot.lane.b32.xlu0 %v36, 80
    %v38 = vpop.permute.xlu0 %37
    %vm39 = vcmask 720512
    %40 = vst.msk [vmem:[#allocation0] sm:$0x1] %vm39, %v38
    %s41 = scalar_lea.vmem %s0, 9
    %v42 = vld [vmem:[%s41] sm:$0x1]
    %43 = vrot.lane.b32.xlu0 %v42, 72
    %v44 = vpop.permute.xlu0 %43
    %vm45 = vcmask 654912
    %46 = vst.msk [vmem:[#allocation0] sm:$0x1] %vm45, %v44
    %s47 = scalar_lea.vmem %s0, 8
    %v48 = vld [vmem:[%s47] sm:$0x1]
    %49 = vrot.lane.b32.xlu0 %v48, 64
    %v50 = vpop.permute.xlu0 %49
    %vm51 = vcmask 589312
    %52 = vst.msk [vmem:[#allocation0] sm:$0x1] %vm51, %v50
    %s53 = scalar_lea.vmem %s0, 7
    %v54 = vld [vmem:[%s53] sm:$0x1]
    %55 = vrot.lane.b32.xlu0 %v54, 56
    %v56 = vpop.permute.xlu0 %55
    %vm57 = vcmask 523712
    %58 = vst.msk [vmem:[#allocation0] sm:$0x1] %vm57, %v56
    %s59 = scalar_lea.vmem %s0, 6
    %v60 = vld [vmem:[%s59] sm:$0x1]
    %61 = vrot.lane.b32.xlu0 %v60, 48
    %v62 = vpop.permute.xlu0 %61
    %vm63 = vcmask 458112
    %64 = vst.msk [vmem:[#allocation0] sm:$0x1] %vm63, %v62
    %s65 = scalar_lea.vmem %s0, 5
    %v66 = vld [vmem:[%s65] sm:$0x1]
    %67 = vrot.lane.b32.xlu0 %v66, 40
    %v68 = vpop.permute.xlu0 %67
    %vm69 = vcmask 392512
    %70 = vst.msk [vmem:[#allocation0] sm:$0x1] %vm69, %v68
    %s71 = scalar_lea.vmem %s0, 4
    %v72 = vld [vmem:[%s71] sm:$0x1]
    %73 = vrot.lane.b32.xlu0 %v72, 32
    %v74 = vpop.permute.xlu0 %73
    %vm75 = vcmask 326912
    %76 = vst.msk [vmem:[#allocation0] sm:$0x1] %vm75, %v74
    %s77 = scalar_lea.vmem %s0, 3
    %v78 = vld [vmem:[%s77] sm:$0x1]
    %79 = vrot.lane.b32.xlu0 %v78, 24
    %v80 = vpop.permute.xlu0 %79
    %vm81 = vcmask 261312
    %82 = vst.msk [vmem:[#allocation0] sm:$0x1] %vm81, %v80
    %s83 = scalar_lea.vmem %s0, 2
    %v84 = vld [vmem:[%s83] sm:$0x1]
    %85 = vrot.lane.b32.xlu0 %v84, 16
    %v86 = vpop.permute.xlu0 %85
    %vm87 = vcmask 195712
    %88 = vst.msk [vmem:[#allocation0] sm:$0x1] %vm87, %v86
    %s89 = scalar_lea.vmem %s0, 1
    %v90 = vld [vmem:[%s89] sm:$0x1]
    %91 = vrot.lane.b32.xlu0 %v90, 8
    %v92 = vpop.permute.xlu0 %91
    %vm93 = vcmask 130112
    %94 = vst.msk [vmem:[#allocation0] sm:$0x1] %vm93, %v92
    %s96 = sshllo.u32 0, 1
    %v98 = vld [vmem:[#allocation0] sm:%s96]
    %s99 = sshllo.u32 0, 1
    %100 = vst [vmem:[%s1] sm:%s99] %v98

// kernel: _lambda_.9
$region0: #{_lambda_.9}
  #allocation0 [shape = 'u32[]', space=smem, size = 0x4, offset = 0x4, fixed_abs, tag = 'smem constant byte address 0x4 - core index']
  #allocation1 [shape = 'u32[144,128]{1,0:T(1,128)}', space=vmem, size = 0x12000, scoped, tag = 'internal scratch']
  %s0 = inlined_call_operand.vmem [shape: f32[32,128], index: 0, kind: input, shape index: {}]
  %s1 = inlined_call_operand.vmem [shape: f32[2,128], index: 1, kind: input, shape index: {}]
  %s2 = inlined_call_operand.vmem [shape: f32[32,128], index: 2, kind: output, shape index: {}]
  %s3 = sld [smem:[#allocation0]]
  $region18: #{_lambda_.9} parent=0
    _
  %s5 = ssub.s32 1, %s3
  %s6 = scalar_select 0, %s5, %s3
  // Predicated region
  $region2: #{_lambda_.9} parent=0 // pred_check
    _
  $region3: #{_lambda_.9} parent=0 // pred_check_branch
    %8 = sbr.rel (0) target = $region5
  $region4: #{_lambda_.9} parent=0 // pred_region
    _
  $region5: #{_lambda_.9} parent=0 // pred_fallthru
    _
  // Predicated region
  $region6: #{_lambda_.9} parent=0 // pred_check
    _
  $region7: #{_lambda_.9} parent=0 // pred_check_branch
    %10 = sbr.rel (0) target = $region9
  $region8: #{_lambda_.9} parent=0 // pred_region
    _
  $region9: #{_lambda_.9} parent=0 // pred_fallthru
    _
  %v11 = vld [vmem:[%s0] sm:$0xff]
  %v12 = vld [vmem:[%s0 + $0x8] sm:$0xff]
  %v13 = vld [vmem:[%s0 + $0x10] sm:$0xff]
  %v14 = vld [vmem:[%s0 + $0x18] sm:$0xff]
  %v15 = vld [vmem:[%s1] sm:$0x1]
  %v16 = vlaneseq
  %v17 = vshrl.u32 %v16, 7
  %v18 = vsub.s32 0, %v17
  %v19 = vrot.slane %v15, %v18
  %v20 = vmul.f32 %v11, %v19
  %v21 = vmul.f32 %v12, %v19
  %v22 = vmul.f32 %v13, %v19
  %v23 = vmul.f32 %v14, %v19
  %v24 = vld [vmem:[%s1 + $0x1] sm:$0x1]
  %v25 = vlaneseq
  %v26 = vshrl.u32 %v25, 7
  %v27 = vsub.s32 0, %v26
  %v28 = vrot.slane %v24, %v27
  %v29 = vadd.f32 %v20, %v28
  %v30 = vadd.f32 %v21, %v28
  %v31 = vadd.f32 %v22, %v28
  %v32 = vadd.f32 %v23, %v28
  %v33 = vmax.f32 %v29, 0.0
  %v34 = vmax.f32 %v30, 0.0
  %v35 = vmax.f32 %v31, 0.0
  %v36 = vmax.f32 %v32, 0.0
  %37 = vst [vmem:[%s2] sm:$0xff] %v33
  %38 = vst [vmem:[%s2 + $0x8] sm:$0xff] %v34
  %39 = vst [vmem:[%s2 + $0x10] sm:$0xff] %v35
  %40 = vst [vmem:[%s2 + $0x18] sm:$0xff] %v36
  // Predicated region
  $region10: #{_lambda_.9} parent=0 // pred_check
    _
  $region11: #{_lambda_.9} parent=0 // pred_check_branch
    %42 = sbr.rel (0) target = $region13
  $region12: #{_lambda_.9} parent=0 // pred_region
    _
  $region13: #{_lambda_.9} parent=0 // pred_fallthru
    _
  // Predicated region
  $region14: #{_lambda_.9} parent=0 // pred_check
    _
  $region15: #{_lambda_.9} parent=0 // pred_check_branch
    %44 = sbr.rel (0) target = $region17
  $region16: #{_lambda_.9} parent=0 // pred_region
    _
  $region17: #{_lambda_.9} parent=0 // pred_fallthru
    _

// kernel: _lambda_.8
$region0: #{_lambda_.8}
  #allocation0 [shape = 'u32[]', space=smem, size = 0x4, offset = 0x4, fixed_abs, tag = 'smem constant byte address 0x4 - core index']
  #allocation1 [shape = 'u32[144,128]{1,0:T(1,128)}', space=vmem, size = 0x12000, scoped, tag = 'internal scratch']
  %s0 = inlined_call_operand.vmem [shape: bf16[512,36], index: 0, kind: input, shape index: {}]
  %s1 = inlined_call_operand.vmem [shape: bf16[36,8], index: 1, kind: input, shape index: {}]
  %s2 = inlined_call_operand.vmem [shape: f32[512,8], index: 2, kind: output, shape index: {0}]
  %s3 = inlined_call_operand.vmem [shape: f32[8,8], index: 3, kind: output, shape index: {1}]
  %s4 = inlined_call_operand.vmem [shape: f32[8,8], index: 4, kind: output, shape index: {2}]
  %5 = xla_tuple %s2, %s3, %s4
  %s6 = sld [smem:[#allocation0]]
  $region61: #{_lambda_.8} parent=0
    _
  %s8 = ssub.s32 1, %s6
  %s9 = scalar_select 0, %s8, %s6
  loop: start=0, step=1, limit=4
  $region2: #{_lambda_.8} parent=0 // loop_pre_header
    _
  $region3: #{_lambda_.8} parent=0 // loop_header
    %s11 = sphi 0, %s15
    %p12 = scmp.ge.s32.totalorder %s11, 4
    %s21 = sphi 0, %s23
    %s24 = sphi 0, %s21
    %s25 = sphi 0, %s24
    %s41 = sphi 0, %s25
    %s45 = sphi 0, %s45
    %s47 = sphi 0, %s45
    %s48 = sphi 0, %s47
    %s62 = sphi 0, %s48
    %s68 = sphi 0, %s70
    %s71 = sphi 0, %s68
    %s72 = sphi 0, %s71
    %s88 = sphi 0, %s72
    %s92 = sphi 0, %s92
    %s94 = sphi 0, %s92
    %s95 = sphi 0, %s94
    %s109 = sphi 0, %s95
    %s113 = sphi 0, %s113
    %s115 = sphi 0, %s113
    %s116 = sphi 0, %s115
    %s130 = sphi 0, %s116
  $region4: #{_lambda_.8} parent=0 // loop_header_branch
    %14 = sbr.rel (%p12) target = $region8
  $region5: #{_lambda_.8} parent=0 // loop_body
    %s16 = ssub.s32 %s11, 1
    %s17 = ssub.s32 %s11, 2
    %s18 = sadd.s32 %s11, 1
    %s19 = ssub.s32 %s11, %s18
    %p20 = scmp.eq.s32.totalorder %s19, 0
    %s22 = sadd.s32 %s21, 1
    %s23 = scalar_select %p20, %s21, %s22
    %p26 = pneg %p20
    %p27 = scmp.eq.s32.totalorder %s11, 1
    %p28 = por %p26, %p27
    %p29 = scmp.ne.s32.totalorder %s21, %s24
    %p30 = scmp.eq.s32.totalorder %s11, 0
    %p31 = por %p29, %p30
    %p32 = scmp.ne.s32.totalorder %s21, %s24
    %p33 = scmp.eq.s32.totalorder %s16, 1
    %p34 = por %p32, %p33
    %p35 = scmp.ne.s32.totalorder %s24, %s25
    %p36 = scmp.eq.s32.totalorder %s16, 0
    %p37 = por %p35, %p36
    %p38 = scmp.ne.s32.totalorder %s24, %s25
    %p39 = scmp.eq.s32.totalorder %s17, 1
    %p40 = por %p38, %p39
    %p42 = scmp.ne.s32.totalorder %s25, %s41
    %p43 = scmp.eq.s32.totalorder %s17, 0
    %p44 = por %p42, %p43
    %s46 = sadd.s32 %s45, 1
    %p49 = scmp.eq.s32.totalorder %s11, 1
    %p50 = scmp.ne.s32.totalorder %s45, %s47
    %p51 = scmp.eq.s32.totalorder %s11, 0
    %p52 = por %p50, %p51
    %p53 = scmp.ne.s32.totalorder %s45, %s47
    %p54 = scmp.eq.s32.totalorder %s16, 1
    %p55 = por %p53, %p54
    %p56 = scmp.ne.s32.totalorder %s47, %s48
    %p57 = scmp.eq.s32.totalorder %s16, 0
    %p58 = por %p56, %p57
    %p59 = scmp.ne.s32.totalorder %s47, %s48
    %p60 = scmp.eq.s32.totalorder %s17, 1
    %p61 = por %p59, %p60
    %p63 = scmp.ne.s32.totalorder %s48, %s62
    %p64 = scmp.eq.s32.totalorder %s17, 0
    %p65 = por %p63, %p64
    %s66 = ssub.s32 %s11, %s18
    %p67 = scmp.eq.s32.totalorder %s66, 0
    %s69 = sadd.s32 %s68, 1
    %s70 = scalar_select %p67, %s68, %s69
    %p73 = pneg %p67
    %p74 = scmp.eq.s32.totalorder %s11, 1
    %p75 = por %p73, %p74
    %p76 = scmp.ne.s32.totalorder %s68, %s71
    %p77 = scmp.eq.s32.totalorder %s11, 0
    %p78 = por %p76, %p77
    %p79 = scmp.ne.s32.totalorder %s68, %s71
    %p80 = scmp.eq.s32.totalorder %s16, 1
    %p81 = por %p79, %p80
    %p82 = scmp.ne.s32.totalorder %s71, %s72
    %p83 = scmp.eq.s32.totalorder %s16, 0
    %p84 = por %p82, %p83
    %p85 = scmp.ne.s32.totalorder %s71, %s72
    %p86 = scmp.eq.s32.totalorder %s17, 1
    %p87 = por %p85, %p86
    %p89 = scmp.ne.s32.totalorder %s72, %s88
    %p90 = scmp.eq.s32.totalorder %s17, 0
    %p91 = por %p89, %p90
    %s93 = sadd.s32 %s92, 1
    %p96 = scmp.eq.s32.totalorder %s11, 1
    %p97 = scmp.ne.s32.totalorder %s92, %s94
    %p98 = scmp.eq.s32.totalorder %s11, 0
    %p99 = por %p97, %p98
    %p100 = scmp.ne.s32.totalorder %s92, %s94
    %p101 = scmp.eq.s32.totalorder %s16, 1
    %p102 = por %p100, %p101
    %p103 = scmp.ne.s32.totalorder %s94, %s95
    %p104 = scmp.eq.s32.totalorder %s16, 0
    %p105 = por %p103, %p104
    %p106 = scmp.ne.s32.totalorder %s94, %s95
    %p107 = scmp.eq.s32.totalorder %s17, 1
    %p108 = por %p106, %p107
    %p110 = scmp.ne.s32.totalorder %s95, %s109
    %p111 = scmp.eq.s32.totalorder %s17, 0
    %p112 = por %p110, %p111
    %s114 = sadd.s32 %s113, 1
    %p117 = scmp.eq.s32.totalorder %s11, 1
    %p118 = scmp.ne.s32.totalorder %s113, %s115
    %p119 = scmp.eq.s32.totalorder %s11, 0
    %p120 = por %p118, %p119
    %p121 = scmp.ne.s32.totalorder %s113, %s115
    %p122 = scmp.eq.s32.totalorder %s16, 1
    %p123 = por %p121, %p122
    %p124 = scmp.ne.s32.totalorder %s115, %s116
    %p125 = scmp.eq.s32.totalorder %s16, 0
    %p126 = por %p124, %p125
    %p127 = scmp.ne.s32.totalorder %s115, %s116
    %p128 = scmp.eq.s32.totalorder %s17, 1
    %p129 = por %p127, %p128
    %p131 = scmp.ne.s32.totalorder %s116, %s130
    %p132 = scmp.eq.s32.totalorder %s17, 0
    %p133 = por %p131, %p132
    %p134 = scmp.le.s32.totalorder 1, %s11
    %p135 = scmp.lt.s32.totalorder %s11, 3
    %p136 = pnand %p134, %p135
    %p137 = pneg %p136
    // Predicated region
    $region9: #{_lambda_.8} parent=5 // pred_check
      _
    $region10: #{_lambda_.8} parent=5 // pred_check_branch
      %139 = sbr.rel (%p136) target = $region12
    $region11: #{_lambda_.8} parent=5 // pred_region
      %s140 = ssub.s32 %s11, 1
      // Predicated region
      $region13: #{_lambda_.8} parent=11 // pred_check
        %p141 = pneg %p58
      $region14: #{_lambda_.8} parent=11 // pred_check_branch
        %143 = sbr.rel (%p141) target = $region16
      $region15: #{_lambda_.8} parent=11 // pred_region
        _
      $region16: #{_lambda_.8} parent=11 // pred_fallthru
        _
    $region12: #{_lambda_.8} parent=5 // pred_fallthru
      _
    %p144 = scmp.lt.s32.totalorder %s11, 2
    // Predicated region
    $region17: #{_lambda_.8} parent=5 // pred_check
      %p145 = pneg %p144
    $region18: #{_lambda_.8} parent=5 // pred_check_branch
      %147 = sbr.rel (%p145) target = $region20
    $region19: #{_lambda_.8} parent=5 // pred_region
      // Predicated region
      $region21: #{_lambda_.8} parent=19 // pred_check
        %p148 = pneg %p31
      $region22: #{_lambda_.8} parent=19 // pred_check_branch
        %150 = sbr.rel (%p148) target = $region24
      $region23: #{_lambda_.8} parent=19 // pred_region
        %s151 = smul.u32 32, %s11
        %p152 = scmp.lt.s32.totalorder %s151, 63
        %s153 = scalar_select %p152, %s151, 63
        %s154 = smul.addr %s153, 4
        %s155 = scalar_lea.vmem %s0, %s154
        %s156 = smul.u32 32, %s11
      $region24: #{_lambda_.8} parent=19 // pred_fallthru
        _
    $region20: #{_lambda_.8} parent=5 // pred_fallthru
      _
    %p157 = scmp.le.s32.totalorder 1, %s11
    %p158 = scmp.lt.s32.totalorder %s11, 3
    %p159 = pnand %p157, %p158
    %p160 = pneg %p159
    // Predicated region
    $region25: #{_lambda_.8} parent=5 // pred_check
      _
    $region26: #{_lambda_.8} parent=5 // pred_check_branch
      %162 = sbr.rel (%p159) target = $region28
    $region27: #{_lambda_.8} parent=5 // pred_region
      %s163 = ssub.s32 %s11, 1
      %s164 = smul.u32 32, %s16
      %p165 = scmp.lt.s32.totalorder %s164, 63
      %s166 = scalar_select %p165, %s164, 63
      %s167 = smul.addr %s166, 4
      %s168 = scalar_lea.vmem %s0, %s167
      %p169 = pneg %p37
      %p170 = pneg %p34
      %p171 = pneg %p58
      %p172 = pneg %p55
      %p173 = pneg %p84
      %p174 = pneg %p81
      %s175 = smul.u32 32, %s16
      %p176 = scmp.lt.s32.totalorder %s175, 63
      %s177 = scalar_select %p176, %s175, 63
      %s178 = smul.addr %s177, 8
      %s179 = scalar_lea.vmem %s2, %s178
      %p180 = pneg %p105
      %p181 = pneg %p102
      %p182 = pneg %p126
      %p183 = pneg %p123
      %s184 = smul.u32 32, %s16
      %p185 = scmp.lt.s32.totalorder %s184, 63
      %s186 = scalar_select %p185, %s184, 63
      %s187 = smul.addr %s186, 4
      %s188 = scalar_lea.vmem %s0, %s187
      %s189 = smul.u32 32, %s16
      %s190 = smul.u32 32, %s16
      %p191 = scmp.lt.s32.totalorder %s190, 63
      %s192 = scalar_select %p191, %s190, 63
      %s193 = smul.addr %s192, 8
      %s194 = scalar_lea.vmem %s2, %s193
      %s195 = smul.u32 32, %s16
      %p197 = scmp.eq.s32.totalorder %s16, 0
      // Predicated region
      $region29: #{_lambda_.8} parent=27 // pred_check
        %p198 = pneg %p197
      $region30: #{_lambda_.8} parent=27 // pred_check_branch
        %200 = sbr.rel (%p198) target = $region32
      $region31: #{_lambda_.8} parent=27 // pred_region
        %vm201 = vcmask 64512
        %202 = vst.msk [vmem:[%s3] sm:$0xff] %vm201, 0.0
        %203 = vst.msk [vmem:[%s4] sm:$0xff] %vm201, 0.0
      $region32: #{_lambda_.8} parent=27 // pred_fallthru
        _
      %v204 = vld [vmem:[%s188] sm:$0xf]
      %v205 = vld [vmem:[%s188 + $0x4] sm:$0xf]
      %v206 = vld [vmem:[%s188 + $0x8] sm:$0xf]
      %v207 = vld [vmem:[%s188 + $0xc] sm:$0xf]
      %v208 = vld [vmem:[%s188 + $0x10] sm:$0xf]
      %v209 = vld [vmem:[%s188 + $0x14] sm:$0xf]
      %v210 = vld [vmem:[%s188 + $0x18] sm:$0xf]
      %v211 = vld [vmem:[%s188 + $0x1c] sm:$0xf]
      %v212 = vld [vmem:[%s188 + $0x20] sm:$0xf]
      %v213 = vld [vmem:[%s188 + $0x24] sm:$0xf]
      %v214 = vld [vmem:[%s188 + $0x28] sm:$0xf]
      %v215 = vld [vmem:[%s188 + $0x2c] sm:$0xf]
      %v216 = vld [vmem:[%s188 + $0x30] sm:$0xf]
      %v217 = vld [vmem:[%s188 + $0x34] sm:$0xf]
      %v218 = vld [vmem:[%s188 + $0x38] sm:$0xf]
      %v219 = vld [vmem:[%s188 + $0x3c] sm:$0xf]
      %v220 = vld [vmem:[%s188 + $0x40] sm:$0xf]
      %v221 = vld [vmem:[%s188 + $0x44] sm:$0xf]
      %v222 = vld [vmem:[%s188 + $0x48] sm:$0xf]
      %v223 = vld [vmem:[%s188 + $0x4c] sm:$0xf]
      %v224 = vld [vmem:[%s188 + $0x50] sm:$0xf]
      %v225 = vld [vmem:[%s188 + $0x54] sm:$0xf]
      %v226 = vld [vmem:[%s188 + $0x58] sm:$0xf]
      %v227 = vld [vmem:[%s188 + $0x5c] sm:$0xf]
      %v228 = vld [vmem:[%s188 + $0x60] sm:$0xf]
      %v229 = vld [vmem:[%s188 + $0x64] sm:$0xf]
      %v230 = vld [vmem:[%s188 + $0x68] sm:$0xf]
      %v231 = vld [vmem:[%s188 + $0x6c] sm:$0xf]
      %v232 = vld [vmem:[%s188 + $0x70] sm:$0xf]
      %v233 = vld [vmem:[%s188 + $0x74] sm:$0xf]
      %v234 = vld [vmem:[%s188 + $0x78] sm:$0xf]
      %v235 = vld [vmem:[%s188 + $0x7c] sm:$0xf]
      %v236 = vld [vmem:[%s1] sm:$0xf]
      %v237 = vld [vmem:[%s1 + $0x4] sm:$0xf]
      %v238 = vld [vmem:[%s1 + $0x8] sm:$0xf]
      %v239 = vld [vmem:[%s1 + $0xc] sm:$0xf]
      %v240 = vld [vmem:[%s1 + $0x10] sm:$0x3]
      %v273 = vunpack.c.l.b16 %v204
      %v274 = vunpack.c.l.b16 %v205
      %v275 = vunpack.c.l.b16 %v206
      %v276 = vunpack.c.l.b16 %v207
      %v277 = vunpack.c.l.b16 %v208
      %v278 = vunpack.c.l.b16 %v209
      %v279 = vunpack.c.l.b16 %v210
      %v280 = vunpack.c.l.b16 %v211
      %v281 = vunpack.c.l.b16 %v212
      %v282 = vunpack.c.l.b16 %v213
      %v283 = vunpack.c.l.b16 %v214
      %v284 = vunpack.c.l.b16 %v215
      %v285 = vunpack.c.l.b16 %v216
      %v286 = vunpack.c.l.b16 %v217
      %v287 = vunpack.c.l.b16 %v218
      %v288 = vunpack.c.l.b16 %v219
      %v289 = vunpack.c.l.b16 %v220
      %v290 = vunpack.c.l.b16 %v221
      %v291 = vunpack.c.l.b16 %v222
      %v292 = vunpack.c.l.b16 %v223
      %v293 = vunpack.c.l.b16 %v224
      %v294 = vunpack.c.l.b16 %v225
      %v295 = vunpack.c.l.b16 %v226
      %v296 = vunpack.c.l.b16 %v227
      %v297 = vunpack.c.l.b16 %v228
      %v298 = vunpack.c.l.b16 %v229
      %v299 = vunpack.c.l.b16 %v230
      %v300 = vunpack.c.l.b16 %v231
      %v301 = vunpack.c.l.b16 %v232
      %v302 = vunpack.c.l.b16 %v233
      %v303 = vunpack.c.l.b16 %v234
      %v304 = vunpack.c.l.b16 %v235
      %v305 = vpack.c.b16 %v274, %v273
      %v306 = vpack.c.b16 %v276, %v275
      %v307 = vpack.c.b16 %v278, %v277
      %v308 = vpack.c.b16 %v280, %v279
      %v309 = vpack.c.b16 %v282, %v281
      %v310 = vpack.c.b16 %v284, %v283
      %v311 = vpack.c.b16 %v286, %v285
      %v312 = vpack.c.b16 %v288, %v287
      %v313 = vpack.c.b16 %v290, %v289
      %v314 = vpack.c.b16 %v292, %v291
      %v315 = vpack.c.b16 %v294, %v293
      %v316 = vpack.c.b16 %v296, %v295
      %v317 = vpack.c.b16 %v298, %v297
      %v318 = vpack.c.b16 %v300, %v299
      %v319 = vpack.c.b16 %v302, %v301
      %v320 = vpack.c.b16 %v304, %v303
      %v326 = vunpack.c.l.b16 %v236
      %v327 = vunpack.c.l.b16 %v237
      %v328 = vunpack.c.l.b16 %v238
      %v329 = vunpack.c.l.b16 %v239
      %v330 = vunpack.c.l.b16 %v240
      %v331 = vpack.c.b16 %v327, %v326
      %v332 = vpack.c.b16 %v329, %v328
      %v333 = vpack.c.b16 %v330, %v330
      %vm336 = vcmask 293888
      %v338 = vsel %vm336, %v305, 0
      %v341 = vsel %vm336, %v306, 0
      %v344 = vsel %vm336, %v307, 0
      %v347 = vsel %vm336, %v308, 0
      %v350 = vsel %vm336, %v309, 0
      %v353 = vsel %vm336, %v310, 0
      %v356 = vsel %vm336, %v311, 0
      %v359 = vsel %vm336, %v312, 0
      %v362 = vsel %vm336, %v313, 0
      %v365 = vsel %vm336, %v314, 0
      %v368 = vsel %vm336, %v315, 0
      %v371 = vsel %vm336, %v316, 0
      %v374 = vsel %vm336, %v317, 0
      %v377 = vsel %vm336, %v318, 0
      %v380 = vsel %vm336, %v319, 0
      %v383 = vsel %vm336, %v320, 0
      %vm385 = vcmask 1041408
      %v387 = vsel %vm385, %v333, 0
      %389 = vmatprep.subr.bf16.mxu0 0
      %390 = vmatpush1.bf16.msra.mxu0 %v331
      %391 = vmatprep.subr.bf16.mxu0 0
      %392 = vmatpush1.bf16.msra.mxu0 %v332
      %393 = vmatprep.subr.bf16.mxu0 0
      %394 = vmatpush1.bf16.msra.mxu0 %v387
      %395 = vmatprep.subr.bf16.mxu0 0
      %396 = vmatpush1.bf16.msra.mxu0 0
      %397 = vmatprep.subr.bf16.mxu0 0
      %398 = vmatpush1.bf16.msra.mxu0 0
      %399 = vmatprep.subr.bf16.mxu0 0
      %400 = vmatpush1.bf16.msra.mxu0 0
      %401 = vmatprep.subr.bf16.mxu0 0
      %402 = vmatpush1.bf16.msra.mxu0 0
      %403 = vmatprep.subr.bf16.mxu0 0
      %404 = vmatpush1.bf16.msra.mxu0 0
      %405 = vmatprep.subr.bf16.mxu0 0
      %406 = vmatpush1.bf16.msra.mxu0 0
      %407 = vmatprep.subr.bf16.mxu0 0
      %408 = vmatpush1.bf16.msra.mxu0 0
      %409 = vmatprep.subr.bf16.mxu0 0
      %410 = vmatpush1.bf16.msra.mxu0 0
      %411 = vmatprep.subr.bf16.mxu0 0
      %412 = vmatpush1.bf16.msra.mxu0 0
      %413 = vmatprep.subr.bf16.mxu0 0
      %414 = vmatpush1.bf16.msra.mxu0 0
      %415 = vmatprep.subr.bf16.mxu0 0
      %416 = vmatpush1.bf16.msra.mxu0 0
      %417 = vmatprep.subr.bf16.mxu0 0
      %418 = vmatpush1.bf16.msra.mxu0 0
      %419 = vmatprep.subr.bf16.mxu0 0
      %420 = vmatpush1.bf16.msra.mxu0 0
      %421 = vmatprep.mubr.bf16.mxu0 0
      %422 = vmatmul.mubr.bf16.gmra.mrb[0].mxu0 %v338
      %v423 = vpop.f32.mrb[0].mxu0
      %v424 = vadd.f32 0.0, %v423
      %v425 = vpop.f32.mrb[0].mxu0
      %v426 = vpop.f32.mrb[0].mxu0
      %v427 = vadd.f32 0.0, %v426
      %v428 = vpop.f32.mrb[0].mxu0
      %429 = vmatprep.mubr.bf16.mxu0 0
      %430 = vmatmul.mubr.bf16.gmra.mrb[0].mxu0 %v341
      %v431 = vpop.f32.mrb[0].mxu0
      %v432 = vadd.f32 0.0, %v431
      %v433 = vpop.f32.mrb[0].mxu0
      %v434 = vpop.f32.mrb[0].mxu0
      %v435 = vadd.f32 0.0, %v434
      %v436 = vpop.f32.mrb[0].mxu0
      %437 = vmatprep.mubr.bf16.mxu0 0
      %438 = vmatmul.mubr.bf16.gmra.mrb[0].mxu0 %v344
      %v439 = vpop.f32.mrb[0].mxu0
      %v440 = vadd.f32 0.0, %v439
      %v441 = vpop.f32.mrb[0].mxu0
      %v442 = vpop.f32.mrb[0].mxu0
      %v443 = vadd.f32 0.0, %v442
      %v444 = vpop.f32.mrb[0].mxu0
      %445 = vmatprep.mubr.bf16.mxu0 0
      %446 = vmatmul.mubr.bf16.gmra.mrb[0].mxu0 %v347
      %v447 = vpop.f32.mrb[0].mxu0
      %v448 = vadd.f32 0.0, %v447
      %v449 = vpop.f32.mrb[0].mxu0
      %v450 = vpop.f32.mrb[0].mxu0
      %v451 = vadd.f32 0.0, %v450
      %v452 = vpop.f32.mrb[0].mxu0
      %453 = vmatprep.mubr.bf16.mxu0 0
      %454 = vmatmul.mubr.bf16.gmra.mrb[0].mxu0 %v350
      %v455 = vpop.f32.mrb[0].mxu0
      %v456 = vadd.f32 0.0, %v455
      %v457 = vpop.f32.mrb[0].mxu0
      %v458 = vpop.f32.mrb[0].mxu0
      %v459 = vadd.f32 0.0, %v458
      %v460 = vpop.f32.mrb[0].mxu0
      %461 = vmatprep.mubr.bf16.mxu0 0
      %462 = vmatmul.mubr.bf16.gmra.mrb[0].mxu0 %v353
      %v463 = vpop.f32.mrb[0].mxu0
      %v464 = vadd.f32 0.0, %v463
      %v465 = vpop.f32.mrb[0].mxu0
      %v466 = vpop.f32.mrb[0].mxu0
      %v467 = vadd.f32 0.0, %v466
      %v468 = vpop.f32.mrb[0].mxu0
      %469 = vmatprep.mubr.bf16.mxu0 0
      %470 = vmatmul.mubr.bf16.gmra.mrb[0].mxu0 %v356
      %v471 = vpop.f32.mrb[0].mxu0
      %v472 = vadd.f32 0.0, %v471
      %v473 = vpop.f32.mrb[0].mxu0
      %v474 = vpop.f32.mrb[0].mxu0
      %v475 = vadd.f32 0.0, %v474
      %v476 = vpop.f32.mrb[0].mxu0
      %477 = vmatprep.mubr.bf16.mxu0 0
      %478 = vmatmul.mubr.bf16.gmra.mrb[0].mxu0 %v359
      %v479 = vpop.f32.mrb[0].mxu0
      %v480 = vadd.f32 0.0, %v479
      %v481 = vpop.f32.mrb[0].mxu0
      %v482 = vpop.f32.mrb[0].mxu0
      %v483 = vadd.f32 0.0, %v482
      %v484 = vpop.f32.mrb[0].mxu0
      %485 = vmatprep.mubr.bf16.mxu0 0
      %486 = vmatmul.mubr.bf16.gmra.mrb[0].mxu0 %v362
      %v487 = vpop.f32.mrb[0].mxu0
      %v488 = vadd.f32 0.0, %v487
      %v489 = vpop.f32.mrb[0].mxu0
      %v490 = vpop.f32.mrb[0].mxu0
      %v491 = vadd.f32 0.0, %v490
      %v492 = vpop.f32.mrb[0].mxu0
      %493 = vmatprep.mubr.bf16.mxu0 0
      %494 = vmatmul.mubr.bf16.gmra.mrb[0].mxu0 %v365
      %v495 = vpop.f32.mrb[0].mxu0
      %v496 = vadd.f32 0.0, %v495
      %v497 = vpop.f32.mrb[0].mxu0
      %v498 = vpop.f32.mrb[0].mxu0
      %v499 = vadd.f32 0.0, %v498
      %v500 = vpop.f32.mrb[0].mxu0
      %501 = vmatprep.mubr.bf16.mxu0 0
      %502 = vmatmul.mubr.bf16.gmra.mrb[0].mxu0 %v368
      %v503 = vpop.f32.mrb[0].mxu0
      %v504 = vadd.f32 0.0, %v503
      %v505 = vpop.f32.mrb[0].mxu0
      %v506 = vpop.f32.mrb[0].mxu0
      %v507 = vadd.f32 0.0, %v506
      %v508 = vpop.f32.mrb[0].mxu0
      %509 = vmatprep.mubr.bf16.mxu0 0
      %510 = vmatmul.mubr.bf16.gmra.mrb[0].mxu0 %v371
      %v511 = vpop.f32.mrb[0].mxu0
      %v512 = vadd.f32 0.0, %v511
      %v513 = vpop.f32.mrb[0].mxu0
      %v514 = vpop.f32.mrb[0].mxu0
      %v515 = vadd.f32 0.0, %v514
      %v516 = vpop.f32.mrb[0].mxu0
      %517 = vmatprep.mubr.bf16.mxu0 0
      %518 = vmatmul.mubr.bf16.gmra.mrb[0].mxu0 %v374
      %v519 = vpop.f32.mrb[0].mxu0
      %v520 = vadd.f32 0.0, %v519
      %v521 = vpop.f32.mrb[0].mxu0
      %v522 = vpop.f32.mrb[0].mxu0
      %v523 = vadd.f32 0.0, %v522
      %v524 = vpop.f32.mrb[0].mxu0
      %525 = vmatprep.mubr.bf16.mxu0 0
      %526 = vmatmul.mubr.bf16.gmra.mrb[0].mxu0 %v377
      %v527 = vpop.f32.mrb[0].mxu0
      %v528 = vadd.f32 0.0, %v527
      %v529 = vpop.f32.mrb[0].mxu0
      %v530 = vpop.f32.mrb[0].mxu0
      %v531 = vadd.f32 0.0, %v530
      %v532 = vpop.f32.mrb[0].mxu0
      %533 = vmatprep.mubr.bf16.mxu0 0
      %534 = vmatmul.mubr.bf16.gmra.mrb[0].mxu0 %v380
      %v535 = vpop.f32.mrb[0].mxu0
      %v536 = vadd.f32 0.0, %v535
      %v537 = vpop.f32.mrb[0].mxu0
      %v538 = vpop.f32.mrb[0].mxu0
      %v539 = vadd.f32 0.0, %v538
      %v540 = vpop.f32.mrb[0].mxu0
      %541 = vmatprep.mubr.bf16.mxu0 0
      %542 = vmatmul.mubr.bf16.gmra.mrb[0].mxu0 %v383
      %v543 = vpop.f32.mrb[0].mxu0
      %v544 = vadd.f32 0.0, %v543
      %v545 = vpop.f32.mrb[0].mxu0
      %v546 = vpop.f32.mrb[0].mxu0
      %v547 = vadd.f32 0.0, %v546
      %v548 = vpop.f32.mrb[0].mxu0
      %549 = vdwg.mxu0
      %vm550 = vcmask 64512
      %551 = vst.msk [vmem:[%s194] sm:$0xff] %vm550, %v424
      %552 = vst.msk [vmem:[%s194 + $0x8] sm:$0xff] %vm550, %v427
      %553 = vst.msk [vmem:[%s194 + $0x10] sm:$0xff] %vm550, %v432
      %554 = vst.msk [vmem:[%s194 + $0x18] sm:$0xff] %vm550, %v435
      %555 = vst.msk [vmem:[%s194 + $0x20] sm:$0xff] %vm550, %v440
      %556 = vst.msk [vmem:[%s194 + $0x28] sm:$0xff] %vm550, %v443
      %557 = vst.msk [vmem:[%s194 + $0x30] sm:$0xff] %vm550, %v448
      %558 = vst.msk [vmem:[%s194 + $0x38] sm:$0xff] %vm550, %v451
      %559 = vst.msk [vmem:[%s194 + $0x40] sm:$0xff] %vm550, %v456
      %560 = vst.msk [vmem:[%s194 + $0x48] sm:$0xff] %vm550, %v459
      %561 = vst.msk [vmem:[%s194 + $0x50] sm:$0xff] %vm550, %v464
      %562 = vst.msk [vmem:[%s194 + $0x58] sm:$0xff] %vm550, %v467
      %563 = vst.msk [vmem:[%s194 + $0x60] sm:$0xff] %vm550, %v472
      %564 = vst.msk [vmem:[%s194 + $0x68] sm:$0xff] %vm550, %v475
      %565 = vst.msk [vmem:[%s194 + $0x70] sm:$0xff] %vm550, %v480
      %566 = vst.msk [vmem:[%s194 + $0x78] sm:$0xff] %vm550, %v483
      %567 = vst.msk [vmem:[%s194 + $0x80] sm:$0xff] %vm550, %v488
      %568 = vst.msk [vmem:[%s194 + $0x88] sm:$0xff] %vm550, %v491
      %569 = vst.msk [vmem:[%s194 + $0x90] sm:$0xff] %vm550, %v496
      %570 = vst.msk [vmem:[%s194 + $0x98] sm:$0xff] %vm550, %v499
      %571 = vst.msk [vmem:[%s194 + $0xa0] sm:$0xff] %vm550, %v504
      %572 = vst.msk [vmem:[%s194 + $0xa8] sm:$0xff] %vm550, %v507
      %573 = vst.msk [vmem:[%s194 + $0xb0] sm:$0xff] %vm550, %v512
      %574 = vst.msk [vmem:[%s194 + $0xb8] sm:$0xff] %vm550, %v515
      %575 = vst.msk [vmem:[%s194 + $0xc0] sm:$0xff] %vm550, %v520
      %576 = vst.msk [vmem:[%s194 + $0xc8] sm:$0xff] %vm550, %v523
      %577 = vst.msk [vmem:[%s194 + $0xd0] sm:$0xff] %vm550, %v528
      %578 = vst.msk [vmem:[%s194 + $0xd8] sm:$0xff] %vm550, %v531
      %579 = vst.msk [vmem:[%s194 + $0xe0] sm:$0xff] %vm550, %v536
      %580 = vst.msk [vmem:[%s194 + $0xe8] sm:$0xff] %vm550, %v539
      %581 = vst.msk [vmem:[%s194 + $0xf0] sm:$0xff] %vm550, %v544
      %582 = vst.msk [vmem:[%s194 + $0xf8] sm:$0xff] %vm550, %v547
      %v583 = vld [vmem:[%s3] sm:$0xff]
      %v584 = vsel %vm550, %v424, 0.0
      %v585 = vsel %vm550, %v427, 0.0
      %v586 = vadd.f32 %v584, %v585
      %v587 = vsel %vm550, %v432, 0.0
      %v588 = vadd.f32 %v586, %v587
      %v589 = vsel %vm550, %v435, 0.0
      %v590 = vadd.f32 %v588, %v589
      %v591 = vsel %vm550, %v440, 0.0
      %v592 = vadd.f32 %v590, %v591
      %v593 = vsel %vm550, %v443, 0.0
      %v594 = vadd.f32 %v592, %v593
      %v595 = vsel %vm550, %v448, 0.0
      %v596 = vadd.f32 %v594, %v595
      %v597 = vsel %vm550, %v451, 0.0
      %v598 = vadd.f32 %v596, %v597
      %v599 = vsel %vm550, %v456, 0.0
      %v600 = vadd.f32 %v598, %v599
      %v601 = vsel %vm550, %v459, 0.0
      %v602 = vadd.f32 %v600, %v601
      %v603 = vsel %vm550, %v464, 0.0
      %v604 = vadd.f32 %v602, %v603
      %v605 = vsel %vm550, %v467, 0.0
      %v606 = vadd.f32 %v604, %v605
      %v607 = vsel %vm550, %v472, 0.0
      %v608 = vadd.f32 %v606, %v607
      %v609 = vsel %vm550, %v475, 0.0
      %v610 = vadd.f32 %v608, %v609
      %v611 = vsel %vm550, %v480, 0.0
      %v612 = vadd.f32 %v610, %v611
      %v613 = vsel %vm550, %v483, 0.0
      %v614 = vadd.f32 %v612, %v613
      %v615 = vsel %vm550, %v488, 0.0
      %v616 = vadd.f32 %v614, %v615
      %v617 = vsel %vm550, %v491, 0.0
      %v618 = vadd.f32 %v616, %v617
      %v619 = vsel %vm550, %v496, 0.0
      %v620 = vadd.f32 %v618, %v619
      %v621 = vsel %vm550, %v499, 0.0
      %v622 = vadd.f32 %v620, %v621
      %v623 = vsel %vm550, %v504, 0.0
      %v624 = vadd.f32 %v622, %v623
      %v625 = vsel %vm550, %v507, 0.0
      %v626 = vadd.f32 %v624, %v625
      %v627 = vsel %vm550, %v512, 0.0
      %v628 = vadd.f32 %v626, %v627
      %v629 = vsel %vm550, %v515, 0.0
      %v630 = vadd.f32 %v628, %v629
      %v631 = vsel %vm550, %v520, 0.0
      %v632 = vadd.f32 %v630, %v631
      %v633 = vsel %vm550, %v523, 0.0
      %v634 = vadd.f32 %v632, %v633
      %v635 = vsel %vm550, %v528, 0.0
      %v636 = vadd.f32 %v634, %v635
      %v637 = vsel %vm550, %v531, 0.0
      %v638 = vadd.f32 %v636, %v637
      %v639 = vsel %vm550, %v536, 0.0
      %v640 = vadd.f32 %v638, %v639
      %v641 = vsel %vm550, %v539, 0.0
      %v642 = vadd.f32 %v640, %v641
      %v643 = vsel %vm550, %v544, 0.0
      %v644 = vadd.f32 %v642, %v643
      %v645 = vsel %vm550, %v547, 0.0
      %v646 = vadd.f32 %v644, %v645
      %v647 = vrot.slane %v646, 4
      %v648 = vadd.f32 %v646, %v647
      %v649 = vrot.slane %v648, 2
      %v650 = vadd.f32 %v648, %v649
      %v651 = vrot.slane %v650, 1
      %v652 = vadd.f32 %v650, %v651
      %v653 = vadd.f32 %v583, %v652
      %654 = vst.msk [vmem:[%s3] sm:$0xff] %vm550, %v653
      %v655 = vld [vmem:[%s4] sm:$0xff]
      %v656 = vmul.f32 %v424, %v424
      %v657 = vmul.f32 %v427, %v427
      %v658 = vmul.f32 %v432, %v432
      %v659 = vmul.f32 %v435, %v435
      %v660 = vmul.f32 %v440, %v440
      %v661 = vmul.f32 %v443, %v443
      %v662 = vmul.f32 %v448, %v448
      %v663 = vmul.f32 %v451, %v451
      %v664 = vmul.f32 %v456, %v456
      %v665 = vmul.f32 %v459, %v459
      %v666 = vmul.f32 %v464, %v464
      %v667 = vmul.f32 %v467, %v467
      %v668 = vmul.f32 %v472, %v472
      %v669 = vmul.f32 %v475, %v475
      %v670 = vmul.f32 %v480, %v480
      %v671 = vmul.f32 %v483, %v483
      %v672 = vmul.f32 %v488, %v488
      %v673 = vmul.f32 %v491, %v491
      %v674 = vmul.f32 %v496, %v496
      %v675 = vmul.f32 %v499, %v499
      %v676 = vmul.f32 %v504, %v504
      %v677 = vmul.f32 %v507, %v507
      %v678 = vmul.f32 %v512, %v512
      %v679 = vmul.f32 %v515, %v515
      %v680 = vmul.f32 %v520, %v520
      %v681 = vmul.f32 %v523, %v523
      %v682 = vmul.f32 %v528, %v528
      %v683 = vmul.f32 %v531, %v531
      %v684 = vmul.f32 %v536, %v536
      %v685 = vmul.f32 %v539, %v539
      %v686 = vmul.f32 %v544, %v544
      %v687 = vmul.f32 %v547, %v547
      %v688 = vsel %vm550, %v656, 0.0
      %v689 = vsel %vm550, %v657, 0.0
      %v690 = vadd.f32 %v688, %v689
      %v691 = vsel %vm550, %v658, 0.0
      %v692 = vadd.f32 %v690, %v691
      %v693 = vsel %vm550, %v659, 0.0
      %v694 = vadd.f32 %v692, %v693
      %v695 = vsel %vm550, %v660, 0.0
      %v696 = vadd.f32 %v694, %v695
      %v697 = vsel %vm550, %v661, 0.0
      %v698 = vadd.f32 %v696, %v697
      %v699 = vsel %vm550, %v662, 0.0
      %v700 = vadd.f32 %v698, %v699
      %v701 = vsel %vm550, %v663, 0.0
      %v702 = vadd.f32 %v700, %v701
      %v703 = vsel %vm550, %v664, 0.0
      %v704 = vadd.f32 %v702, %v703
      %v705 = vsel %vm550, %v665, 0.0
      %v706 = vadd.f32 %v704, %v705
      %v707 = vsel %vm550, %v666, 0.0
      %v708 = vadd.f32 %v706, %v707
      %v709 = vsel %vm550, %v667, 0.0
      %v710 = vadd.f32 %v708, %v709
      %v711 = vsel %vm550, %v668, 0.0
      %v712 = vadd.f32 %v710, %v711
      %v713 = vsel %vm550, %v669, 0.0
      %v714 = vadd.f32 %v712, %v713
      %v715 = vsel %vm550, %v670, 0.0
      %v716 = vadd.f32 %v714, %v715
      %v717 = vsel %vm550, %v671, 0.0
      %v718 = vadd.f32 %v716, %v717
      %v719 = vsel %vm550, %v672, 0.0
      %v720 = vadd.f32 %v718, %v719
      %v721 = vsel %vm550, %v673, 0.0
      %v722 = vadd.f32 %v720, %v721
      %v723 = vsel %vm550, %v674, 0.0
      %v724 = vadd.f32 %v722, %v723
      %v725 = vsel %vm550, %v675, 0.0
      %v726 = vadd.f32 %v724, %v725
      %v727 = vsel %vm550, %v676, 0.0
      %v728 = vadd.f32 %v726, %v727
      %v729 = vsel %vm550, %v677, 0.0
      %v730 = vadd.f32 %v728, %v729
      %v731 = vsel %vm550, %v678, 0.0
      %v732 = vadd.f32 %v730, %v731
      %v733 = vsel %vm550, %v679, 0.0
      %v734 = vadd.f32 %v732, %v733
      %v735 = vsel %vm550, %v680, 0.0
      %v736 = vadd.f32 %v734, %v735
      %v737 = vsel %vm550, %v681, 0.0
      %v738 = vadd.f32 %v736, %v737
      %v739 = vsel %vm550, %v682, 0.0
      %v740 = vadd.f32 %v738, %v739
      %v741 = vsel %vm550, %v683, 0.0
      %v742 = vadd.f32 %v740, %v741
      %v743 = vsel %vm550, %v684, 0.0
      %v744 = vadd.f32 %v742, %v743
      %v745 = vsel %vm550, %v685, 0.0
      %v746 = vadd.f32 %v744, %v745
      %v747 = vsel %vm550, %v686, 0.0
      %v748 = vadd.f32 %v746, %v747
      %v749 = vsel %vm550, %v687, 0.0
      %v750 = vadd.f32 %v748, %v749
      %v751 = vrot.slane %v750, 4
      %v752 = vadd.f32 %v750, %v751
      %v753 = vrot.slane %v752, 2
      %v754 = vadd.f32 %v752, %v753
      %v755 = vrot.slane %v754, 1
      %v756 = vadd.f32 %v754, %v755
      %v757 = vadd.f32 %v655, %v756
      %758 = vst.msk [vmem:[%s4] sm:$0xff] %vm550, %v757
      %s759 = smul.u32 32, %s16
      %p760 = scmp.lt.s32.totalorder %s759, 63
      %s761 = scalar_select %p760, %s759, 63
      %s762 = smul.addr %s761, 8
      %s763 = scalar_lea.vmem %s2, %s762
      // Predicated region
      $region33: #{_lambda_.8} parent=27 // pred_check
        %p764 = pneg %p81
      $region34: #{_lambda_.8} parent=27 // pred_check_branch
        %766 = sbr.rel (%p764) target = $region36
      $region35: #{_lambda_.8} parent=27 // pred_region
        %s767 = smul.u32 32, %s16
      $region36: #{_lambda_.8} parent=27 // pred_fallthru
        _
      // Predicated region
      $region37: #{_lambda_.8} parent=27 // pred_check
        %p768 = pneg %p102
      $region38: #{_lambda_.8} parent=27 // pred_check_branch
        %770 = sbr.rel (%p768) target = $region40
      $region39: #{_lambda_.8} parent=27 // pred_region
        _
      $region40: #{_lambda_.8} parent=27 // pred_fallthru
        _
      // Predicated region
      $region41: #{_lambda_.8} parent=27 // pred_check
        %p771 = pneg %p123
      $region42: #{_lambda_.8} parent=27 // pred_check_branch
        %773 = sbr.rel (%p771) target = $region44
      $region43: #{_lambda_.8} parent=27 // pred_region
        _
      $region44: #{_lambda_.8} parent=27 // pred_fallthru
        _
      // Predicated region
      $region45: #{_lambda_.8} parent=27 // pred_check
        %p774 = pneg %p102
      $region46: #{_lambda_.8} parent=27 // pred_check_branch
        %776 = sbr.rel (%p774) target = $region48
      $region47: #{_lambda_.8} parent=27 // pred_region
        _
      $region48: #{_lambda_.8} parent=27 // pred_fallthru
        _
      // Predicated region
      $region49: #{_lambda_.8} parent=27 // pred_check
        %p777 = pneg %p123
      $region50: #{_lambda_.8} parent=27 // pred_check_branch
        %779 = sbr.rel (%p777) target = $region52
      $region51: #{_lambda_.8} parent=27 // pred_region
        _
      $region52: #{_lambda_.8} parent=27 // pred_fallthru
        _
    $region28: #{_lambda_.8} parent=5 // pred_fallthru
      _
    %p780 = scmp.le.s32.totalorder 2, %s11
    // Predicated region
    $region53: #{_lambda_.8} parent=5 // pred_check
      %p781 = pneg %p780
    $region54: #{_lambda_.8} parent=5 // pred_check_branch
      %783 = sbr.rel (%p781) target = $region56
    $region55: #{_lambda_.8} parent=5 // pred_region
      %s784 = ssub.s32 %s11, 2
      // Predicated region
      $region57: #{_lambda_.8} parent=55 // pred_check
        %p785 = pneg %p87
      $region58: #{_lambda_.8} parent=55 // pred_check_branch
        %787 = sbr.rel (%p785) target = $region60
      $region59: #{_lambda_.8} parent=55 // pred_region
        %s788 = smul.u32 32, %s17
        %p789 = scmp.lt.s32.totalorder %s788, 63
        %s790 = scalar_select %p789, %s788, 63
        %s791 = smul.addr %s790, 8
        %s792 = scalar_lea.vmem %s2, %s791
      $region60: #{_lambda_.8} parent=55 // pred_fallthru
        _
    $region56: #{_lambda_.8} parent=5 // pred_fallthru
      _
  $region6: #{_lambda_.8} parent=0 // loop_footer
    %s15 = sadd.s32 1, %s11
  $region7: #{_lambda_.8} parent=0 // loop_footer_branch
    %10 = sbr.rel target = $region3
  $region8: #{_lambda_.8} parent=0 // loop_exit
    _

// kernel: _lambda_.10
$region0: #{_lambda_.10}
  #allocation0 [shape = 'u32[]', space=smem, size = 0x4, offset = 0x4, fixed_abs, tag = 'smem constant byte address 0x4 - core index']
  #allocation1 [shape = 'u32[144,128]{1,0:T(1,128)}', space=vmem, size = 0x12000, scoped, tag = 'internal scratch']
  %s0 = inlined_call_operand.vmem [shape: bf16[512,72], index: 0, kind: input, shape index: {}]
  %s1 = inlined_call_operand.vmem [shape: bf16[72,8], index: 1, kind: input, shape index: {}]
  %s2 = inlined_call_operand.vmem [shape: f32[512,8], index: 2, kind: output, shape index: {0}]
  %s3 = inlined_call_operand.vmem [shape: f32[8,8], index: 3, kind: output, shape index: {1}]
  %s4 = inlined_call_operand.vmem [shape: f32[8,8], index: 4, kind: output, shape index: {2}]
  %5 = xla_tuple %s2, %s3, %s4
  %s6 = sld [smem:[#allocation0]]
  $region61: #{_lambda_.10} parent=0
    _
  %s8 = ssub.s32 1, %s6
  %s9 = scalar_select 0, %s8, %s6
  loop: start=0, step=1, limit=4
  $region2: #{_lambda_.10} parent=0 // loop_pre_header
    _
  $region3: #{_lambda_.10} parent=0 // loop_header
    %s11 = sphi 0, %s15
    %p12 = scmp.ge.s32.totalorder %s11, 4
    %s21 = sphi 0, %s23
    %s24 = sphi 0, %s21
    %s25 = sphi 0, %s24
    %s41 = sphi 0, %s25
    %s45 = sphi 0, %s45
    %s47 = sphi 0, %s45
    %s48 = sphi 0, %s47
    %s62 = sphi 0, %s48
    %s68 = sphi 0, %s70
    %s71 = sphi 0, %s68
    %s72 = sphi 0, %s71
    %s88 = sphi 0, %s72
    %s92 = sphi 0, %s92
    %s94 = sphi 0, %s92
    %s95 = sphi 0, %s94
    %s109 = sphi 0, %s95
    %s113 = sphi 0, %s113
    %s115 = sphi 0, %s113
    %s116 = sphi 0, %s115
    %s130 = sphi 0, %s116
  $region4: #{_lambda_.10} parent=0 // loop_header_branch
    %14 = sbr.rel (%p12) target = $region8
  $region5: #{_lambda_.10} parent=0 // loop_body
    %s16 = ssub.s32 %s11, 1
    %s17 = ssub.s32 %s11, 2
    %s18 = sadd.s32 %s11, 1
    %s19 = ssub.s32 %s11, %s18
    %p20 = scmp.eq.s32.totalorder %s19, 0
    %s22 = sadd.s32 %s21, 1
    %s23 = scalar_select %p20, %s21, %s22
    %p26 = pneg %p20
    %p27 = scmp.eq.s32.totalorder %s11, 1
    %p28 = por %p26, %p27
    %p29 = scmp.ne.s32.totalorder %s21, %s24
    %p30 = scmp.eq.s32.totalorder %s11, 0
    %p31 = por %p29, %p30
    %p32 = scmp.ne.s32.totalorder %s21, %s24
    %p33 = scmp.eq.s32.totalorder %s16, 1
    %p34 = por %p32, %p33
    %p35 = scmp.ne.s32.totalorder %s24, %s25
    %p36 = scmp.eq.s32.totalorder %s16, 0
    %p37 = por %p35, %p36
    %p38 = scmp.ne.s32.totalorder %s24, %s25
    %p39 = scmp.eq.s32.totalorder %s17, 1
    %p40 = por %p38, %p39
    %p42 = scmp.ne.s32.totalorder %s25, %s41
    %p43 = scmp.eq.s32.totalorder %s17, 0
    %p44 = por %p42, %p43
    %s46 = sadd.s32 %s45, 1
    %p49 = scmp.eq.s32.totalorder %s11, 1
    %p50 = scmp.ne.s32.totalorder %s45, %s47
    %p51 = scmp.eq.s32.totalorder %s11, 0
    %p52 = por %p50, %p51
    %p53 = scmp.ne.s32.totalorder %s45, %s47
    %p54 = scmp.eq.s32.totalorder %s16, 1
    %p55 = por %p53, %p54
    %p56 = scmp.ne.s32.totalorder %s47, %s48
    %p57 = scmp.eq.s32.totalorder %s16, 0
    %p58 = por %p56, %p57
    %p59 = scmp.ne.s32.totalorder %s47, %s48
    %p60 = scmp.eq.s32.totalorder %s17, 1
    %p61 = por %p59, %p60
    %p63 = scmp.ne.s32.totalorder %s48, %s62
    %p64 = scmp.eq.s32.totalorder %s17, 0
    %p65 = por %p63, %p64
    %s66 = ssub.s32 %s11, %s18
    %p67 = scmp.eq.s32.totalorder %s66, 0
    %s69 = sadd.s32 %s68, 1
    %s70 = scalar_select %p67, %s68, %s69
    %p73 = pneg %p67
    %p74 = scmp.eq.s32.totalorder %s11, 1
    %p75 = por %p73, %p74
    %p76 = scmp.ne.s32.totalorder %s68, %s71
    %p77 = scmp.eq.s32.totalorder %s11, 0
    %p78 = por %p76, %p77
    %p79 = scmp.ne.s32.totalorder %s68, %s71
    %p80 = scmp.eq.s32.totalorder %s16, 1
    %p81 = por %p79, %p80
    %p82 = scmp.ne.s32.totalorder %s71, %s72
    %p83 = scmp.eq.s32.totalorder %s16, 0
    %p84 = por %p82, %p83
    %p85 = scmp.ne.s32.totalorder %s71, %s72
    %p86 = scmp.eq.s32.totalorder %s17, 1
    %p87 = por %p85, %p86
    %p89 = scmp.ne.s32.totalorder %s72, %s88
    %p90 = scmp.eq.s32.totalorder %s17, 0
    %p91 = por %p89, %p90
    %s93 = sadd.s32 %s92, 1
    %p96 = scmp.eq.s32.totalorder %s11, 1
    %p97 = scmp.ne.s32.totalorder %s92, %s94
    %p98 = scmp.eq.s32.totalorder %s11, 0
    %p99 = por %p97, %p98
    %p100 = scmp.ne.s32.totalorder %s92, %s94
    %p101 = scmp.eq.s32.totalorder %s16, 1
    %p102 = por %p100, %p101
    %p103 = scmp.ne.s32.totalorder %s94, %s95
    %p104 = scmp.eq.s32.totalorder %s16, 0
    %p105 = por %p103, %p104
    %p106 = scmp.ne.s32.totalorder %s94, %s95
    %p107 = scmp.eq.s32.totalorder %s17, 1
    %p108 = por %p106, %p107
    %p110 = scmp.ne.s32.totalorder %s95, %s109
    %p111 = scmp.eq.s32.totalorder %s17, 0
    %p112 = por %p110, %p111
    %s114 = sadd.s32 %s113, 1
    %p117 = scmp.eq.s32.totalorder %s11, 1
    %p118 = scmp.ne.s32.totalorder %s113, %s115
    %p119 = scmp.eq.s32.totalorder %s11, 0
    %p120 = por %p118, %p119
    %p121 = scmp.ne.s32.totalorder %s113, %s115
    %p122 = scmp.eq.s32.totalorder %s16, 1
    %p123 = por %p121, %p122
    %p124 = scmp.ne.s32.totalorder %s115, %s116
    %p125 = scmp.eq.s32.totalorder %s16, 0
    %p126 = por %p124, %p125
    %p127 = scmp.ne.s32.totalorder %s115, %s116
    %p128 = scmp.eq.s32.totalorder %s17, 1
    %p129 = por %p127, %p128
    %p131 = scmp.ne.s32.totalorder %s116, %s130
    %p132 = scmp.eq.s32.totalorder %s17, 0
    %p133 = por %p131, %p132
    %p134 = scmp.le.s32.totalorder 1, %s11
    %p135 = scmp.lt.s32.totalorder %s11, 3
    %p136 = pnand %p134, %p135
    %p137 = pneg %p136
    // Predicated region
    $region9: #{_lambda_.10} parent=5 // pred_check
      _
    $region10: #{_lambda_.10} parent=5 // pred_check_branch
      %139 = sbr.rel (%p136) target = $region12
    $region11: #{_lambda_.10} parent=5 // pred_region
      %s140 = ssub.s32 %s11, 1
      // Predicated region
      $region13: #{_lambda_.10} parent=11 // pred_check
        %p141 = pneg %p58
      $region14: #{_lambda_.10} parent=11 // pred_check_branch
        %143 = sbr.rel (%p141) target = $region16
      $region15: #{_lambda_.10} parent=11 // pred_region
        _
      $region16: #{_lambda_.10} parent=11 // pred_fallthru
        _
    $region12: #{_lambda_.10} parent=5 // pred_fallthru
      _
    %p144 = scmp.lt.s32.totalorder %s11, 2
    // Predicated region
    $region17: #{_lambda_.10} parent=5 // pred_check
      %p145 = pneg %p144
    $region18: #{_lambda_.10} parent=5 // pred_check_branch
      %147 = sbr.rel (%p145) target = $region20
    $region19: #{_lambda_.10} parent=5 // pred_region
      // Predicated region
      $region21: #{_lambda_.10} parent=19 // pred_check
        %p148 = pneg %p31
      $region22: #{_lambda_.10} parent=19 // pred_check_branch
        %150 = sbr.rel (%p148) target = $region24
      $region23: #{_lambda_.10} parent=19 // pred_region
        %s151 = smul.u32 32, %s11
        %p152 = scmp.lt.s32.totalorder %s151, 63
        %s153 = scalar_select %p152, %s151, 63
        %s154 = smul.addr %s153, 4
        %s155 = scalar_lea.vmem %s0, %s154
        %s156 = smul.u32 32, %s11
      $region24: #{_lambda_.10} parent=19 // pred_fallthru
        _
    $region20: #{_lambda_.10} parent=5 // pred_fallthru
      _
    %p157 = scmp.le.s32.totalorder 1, %s11
    %p158 = scmp.lt.s32.totalorder %s11, 3
    %p159 = pnand %p157, %p158
    %p160 = pneg %p159
    // Predicated region
    $region25: #{_lambda_.10} parent=5 // pred_check
      _
    $region26: #{_lambda_.10} parent=5 // pred_check_branch
      %162 = sbr.rel (%p159) target = $region28
    $region27: #{_lambda_.10} parent=5 // pred_region
      %s163 = ssub.s32 %s11, 1
      %s164 = smul.u32 32, %s16
      %p165 = scmp.lt.s32.totalorder %s164, 63
      %s166 = scalar_select %p165, %s164, 63
      %s167 = smul.addr %s166, 4
      %s168 = scalar_lea.vmem %s0, %s167
      %p169 = pneg %p37
      %p170 = pneg %p34
      %p171 = pneg %p58
      %p172 = pneg %p55
      %p173 = pneg %p84
      %p174 = pneg %p81
      %s175 = smul.u32 32, %s16
      %p176 = scmp.lt.s32.totalorder %s175, 63
      %s177 = scalar_select %p176, %s175, 63
      %s178 = smul.addr %s177, 8
      %s179 = scalar_lea.vmem %s2, %s178
      %p180 = pneg %p105
      %p181 = pneg %p102
      %p182 = pneg %p126
      %p183 = pneg %p123
      %s184 = smul.u32 32, %s16
      %p185 = scmp.lt.s32.totalorder %s184, 63
      %s186 = scalar_select %p185, %s184, 63
      %s187 = smul.addr %s186, 4
      %s188 = scalar_lea.vmem %s0, %s187
      %s189 = smul.u32 32, %s16
      %s190 = smul.u32 32, %s16
      %p191 = scmp.lt.s32.totalorder %s190, 63
      %s192 = scalar_select %p191, %s190, 63
      %s193 = smul.addr %s192, 8
      %s194 = scalar_lea.vmem %s2, %s193
      %s195 = smul.u32 32, %s16
      %p197 = scmp.eq.s32.totalorder %s16, 0
      // Predicated region
      $region29: #{_lambda_.10} parent=27 // pred_check
        %p198 = pneg %p197
      $region30: #{_lambda_.10} parent=27 // pred_check_branch
        %200 = sbr.rel (%p198) target = $region32
      $region31: #{_lambda_.10} parent=27 // pred_region
        %vm201 = vcmask 64512
        %202 = vst.msk [vmem:[%s3] sm:$0xff] %vm201, 0.0
        %203 = vst.msk [vmem:[%s4] sm:$0xff] %vm201, 0.0
      $region32: #{_lambda_.10} parent=27 // pred_fallthru
        _
      %v204 = vld [vmem:[%s188] sm:$0xf]
      %v205 = vld [vmem:[%s188 + $0x4] sm:$0xf]
      %v206 = vld [vmem:[%s188 + $0x8] sm:$0xf]
      %v207 = vld [vmem:[%s188 + $0xc] sm:$0xf]
      %v208 = vld [vmem:[%s188 + $0x10] sm:$0xf]
      %v209 = vld [vmem:[%s188 + $0x14] sm:$0xf]
      %v210 = vld [vmem:[%s188 + $0x18] sm:$0xf]
      %v211 = vld [vmem:[%s188 + $0x1c] sm:$0xf]
      %v212 = vld [vmem:[%s188 + $0x20] sm:$0xf]
      %v213 = vld [vmem:[%s188 + $0x24] sm:$0xf]
      %v214 = vld [vmem:[%s188 + $0x28] sm:$0xf]
      %v215 = vld [vmem:[%s188 + $0x2c] sm:$0xf]
      %v216 = vld [vmem:[%s188 + $0x30] sm:$0xf]
      %v217 = vld [vmem:[%s188 + $0x34] sm:$0xf]
      %v218 = vld [vmem:[%s188 + $0x38] sm:$0xf]
      %v219 = vld [vmem:[%s188 + $0x3c] sm:$0xf]
      %v220 = vld [vmem:[%s188 + $0x40] sm:$0xf]
      %v221 = vld [vmem:[%s188 + $0x44] sm:$0xf]
      %v222 = vld [vmem:[%s188 + $0x48] sm:$0xf]
      %v223 = vld [vmem:[%s188 + $0x4c] sm:$0xf]
      %v224 = vld [vmem:[%s188 + $0x50] sm:$0xf]
      %v225 = vld [vmem:[%s188 + $0x54] sm:$0xf]
      %v226 = vld [vmem:[%s188 + $0x58] sm:$0xf]
      %v227 = vld [vmem:[%s188 + $0x5c] sm:$0xf]
      %v228 = vld [vmem:[%s188 + $0x60] sm:$0xf]
      %v229 = vld [vmem:[%s188 + $0x64] sm:$0xf]
      %v230 = vld [vmem:[%s188 + $0x68] sm:$0xf]
      %v231 = vld [vmem:[%s188 + $0x6c] sm:$0xf]
      %v232 = vld [vmem:[%s188 + $0x70] sm:$0xf]
      %v233 = vld [vmem:[%s188 + $0x74] sm:$0xf]
      %v234 = vld [vmem:[%s188 + $0x78] sm:$0xf]
      %v235 = vld [vmem:[%s188 + $0x7c] sm:$0xf]
      %v236 = vld [vmem:[%s1] sm:$0xf]
      %v237 = vld [vmem:[%s1 + $0x4] sm:$0xf]
      %v238 = vld [vmem:[%s1 + $0x8] sm:$0xf]
      %v239 = vld [vmem:[%s1 + $0xc] sm:$0xf]
      %v240 = vld [vmem:[%s1 + $0x10] sm:$0xf]
      %v241 = vld [vmem:[%s1 + $0x14] sm:$0xf]
      %v242 = vld [vmem:[%s1 + $0x18] sm:$0xf]
      %v243 = vld [vmem:[%s1 + $0x1c] sm:$0xf]
      %v244 = vld [vmem:[%s1 + $0x20] sm:$0xf]
      %v277 = vunpack.c.l.b16 %v204
      %v278 = vunpack.c.l.b16 %v205
      %v279 = vunpack.c.l.b16 %v206
      %v280 = vunpack.c.l.b16 %v207
      %v281 = vunpack.c.l.b16 %v208
      %v282 = vunpack.c.l.b16 %v209
      %v283 = vunpack.c.l.b16 %v210
      %v284 = vunpack.c.l.b16 %v211
      %v285 = vunpack.c.l.b16 %v212
      %v286 = vunpack.c.l.b16 %v213
      %v287 = vunpack.c.l.b16 %v214
      %v288 = vunpack.c.l.b16 %v215
      %v289 = vunpack.c.l.b16 %v216
      %v290 = vunpack.c.l.b16 %v217
      %v291 = vunpack.c.l.b16 %v218
      %v292 = vunpack.c.l.b16 %v219
      %v293 = vunpack.c.l.b16 %v220
      %v294 = vunpack.c.l.b16 %v221
      %v295 = vunpack.c.l.b16 %v222
      %v296 = vunpack.c.l.b16 %v223
      %v297 = vunpack.c.l.b16 %v224
      %v298 = vunpack.c.l.b16 %v225
      %v299 = vunpack.c.l.b16 %v226
      %v300 = vunpack.c.l.b16 %v227
      %v301 = vunpack.c.l.b16 %v228
      %v302 = vunpack.c.l.b16 %v229
      %v303 = vunpack.c.l.b16 %v230
      %v304 = vunpack.c.l.b16 %v231
      %v305 = vunpack.c.l.b16 %v232
      %v306 = vunpack.c.l.b16 %v233
      %v307 = vunpack.c.l.b16 %v234
      %v308 = vunpack.c.l.b16 %v235
      %v309 = vpack.c.b16 %v278, %v277
      %v310 = vpack.c.b16 %v280, %v279
      %v311 = vpack.c.b16 %v282, %v281
      %v312 = vpack.c.b16 %v284, %v283
      %v313 = vpack.c.b16 %v286, %v285
      %v314 = vpack.c.b16 %v288, %v287
      %v315 = vpack.c.b16 %v290, %v289
      %v316 = vpack.c.b16 %v292, %v291
      %v317 = vpack.c.b16 %v294, %v293
      %v318 = vpack.c.b16 %v296, %v295
      %v319 = vpack.c.b16 %v298, %v297
      %v320 = vpack.c.b16 %v300, %v299
      %v321 = vpack.c.b16 %v302, %v301
      %v322 = vpack.c.b16 %v304, %v303
      %v323 = vpack.c.b16 %v306, %v305
      %v324 = vpack.c.b16 %v308, %v307
      %v334 = vunpack.c.l.b16 %v236
      %v335 = vunpack.c.l.b16 %v237
      %v336 = vunpack.c.l.b16 %v238
      %v337 = vunpack.c.l.b16 %v239
      %v338 = vunpack.c.l.b16 %v240
      %v339 = vunpack.c.l.b16 %v241
      %v340 = vunpack.c.l.b16 %v242
      %v341 = vunpack.c.l.b16 %v243
      %v342 = vunpack.c.l.b16 %v244
      %v343 = vpack.c.b16 %v335, %v334
      %v344 = vpack.c.b16 %v337, %v336
      %v345 = vpack.c.b16 %v339, %v338
      %v346 = vpack.c.b16 %v341, %v340
      %v347 = vpack.c.b16 %v342, %v342
      %vm352 = vcmask 588800
      %v354 = vsel %vm352, %v309, 0
      %v357 = vsel %vm352, %v310, 0
      %v360 = vsel %vm352, %v311, 0
      %v363 = vsel %vm352, %v312, 0
      %v366 = vsel %vm352, %v313, 0
      %v369 = vsel %vm352, %v314, 0
      %v372 = vsel %vm352, %v315, 0
      %v375 = vsel %vm352, %v316, 0
      %v378 = vsel %vm352, %v317, 0
      %v381 = vsel %vm352, %v318, 0
      %v384 = vsel %vm352, %v319, 0
      %v387 = vsel %vm352, %v320, 0
      %v390 = vsel %vm352, %v321, 0
      %v393 = vsel %vm352, %v322, 0
      %v396 = vsel %vm352, %v323, 0
      %v399 = vsel %vm352, %v324, 0
      %vm401 = vcmask 1043456
      %v403 = vsel %vm401, %v347, 0
      %405 = vmatprep.subr.bf16.mxu0 0
      %406 = vmatpush1.bf16.msra.mxu0 %v343
      %407 = vmatprep.subr.bf16.mxu0 0
      %408 = vmatpush1.bf16.msra.mxu0 %v344
      %409 = vmatprep.subr.bf16.mxu0 0
      %410 = vmatpush1.bf16.msra.mxu0 %v345
      %411 = vmatprep.subr.bf16.mxu0 0
      %412 = vmatpush1.bf16.msra.mxu0 %v346
      %413 = vmatprep.subr.bf16.mxu0 0
      %414 = vmatpush1.bf16.msra.mxu0 %v403
      %415 = vmatprep.subr.bf16.mxu0 0
      %416 = vmatpush1.bf16.msra.mxu0 0
      %417 = vmatprep.subr.bf16.mxu0 0
      %418 = vmatpush1.bf16.msra.mxu0 0
      %419 = vmatprep.subr.bf16.mxu0 0
      %420 = vmatpush1.bf16.msra.mxu0 0
      %421 = vmatprep.subr.bf16.mxu0 0
      %422 = vmatpush1.bf16.msra.mxu0 0
      %423 = vmatprep.subr.bf16.mxu0 0
      %424 = vmatpush1.bf16.msra.mxu0 0
      %425 = vmatprep.subr.bf16.mxu0 0
      %426 = vmatpush1.bf16.msra.mxu0 0
      %427 = vmatprep.subr.bf16.mxu0 0
      %428 = vmatpush1.bf16.msra.mxu0 0
      %429 = vmatprep.subr.bf16.mxu0 0
      %430 = vmatpush1.bf16.msra.mxu0 0
      %431 = vmatprep.subr.bf16.mxu0 0
      %432 = vmatpush1.bf16.msra.mxu0 0
      %433 = vmatprep.subr.bf16.mxu0 0
      %434 = vmatpush1.bf16.msra.mxu0 0
      %435 = vmatprep.subr.bf16.mxu0 0
      %436 = vmatpush1.bf16.msra.mxu0 0
      %437 = vmatprep.mubr.bf16.mxu0 0
      %438 = vmatmul.mubr.bf16.gmra.mrb[0].mxu0 %v354
      %v439 = vpop.f32.mrb[0].mxu0
      %v440 = vadd.f32 0.0, %v439
      %v441 = vpop.f32.mrb[0].mxu0
      %v442 = vpop.f32.mrb[0].mxu0
      %v443 = vadd.f32 0.0, %v442
      %v444 = vpop.f32.mrb[0].mxu0
      %445 = vmatprep.mubr.bf16.mxu0 0
      %446 = vmatmul.mubr.bf16.gmra.mrb[0].mxu0 %v357
      %v447 = vpop.f32.mrb[0].mxu0
      %v448 = vadd.f32 0.0, %v447
      %v449 = vpop.f32.mrb[0].mxu0
      %v450 = vpop.f32.mrb[0].mxu0
      %v451 = vadd.f32 0.0, %v450
      %v452 = vpop.f32.mrb[0].mxu0
      %453 = vmatprep.mubr.bf16.mxu0 0
      %454 = vmatmul.mubr.bf16.gmra.mrb[0].mxu0 %v360
      %v455 = vpop.f32.mrb[0].mxu0
      %v456 = vadd.f32 0.0, %v455
      %v457 = vpop.f32.mrb[0].mxu0
      %v458 = vpop.f32.mrb[0].mxu0
      %v459 = vadd.f32 0.0, %v458
      %v460 = vpop.f32.mrb[0].mxu0
      %461 = vmatprep.mubr.bf16.mxu0 0
      %462 = vmatmul.mubr.bf16.gmra.mrb[0].mxu0 %v363
      %v463 = vpop.f32.mrb[0].mxu0
      %v464 = vadd.f32 0.0, %v463
      %v465 = vpop.f32.mrb[0].mxu0
      %v466 = vpop.f32.mrb[0].mxu0
      %v467 = vadd.f32 0.0, %v466
      %v468 = vpop.f32.mrb[0].mxu0
      %469 = vmatprep.mubr.bf16.mxu0 0
      %470 = vmatmul.mubr.bf16.gmra.mrb[0].mxu0 %v366
      %v471 = vpop.f32.mrb[0].mxu0
      %v472 = vadd.f32 0.0, %v471
      %v473 = vpop.f32.mrb[0].mxu0
      %v474 = vpop.f32.mrb[0].mxu0
      %v475 = vadd.f32 0.0, %v474
      %v476 = vpop.f32.mrb[0].mxu0
      %477 = vmatprep.mubr.bf16.mxu0 0
      %478 = vmatmul.mubr.bf16.gmra.mrb[0].mxu0 %v369
      %v479 = vpop.f32.mrb[0].mxu0
      %v480 = vadd.f32 0.0, %v479
      %v481 = vpop.f32.mrb[0].mxu0
      %v482 = vpop.f32.mrb[0].mxu0
      %v483 = vadd.f32 0.0, %v482
      %v484 = vpop.f32.mrb[0].mxu0
      %485 = vmatprep.mubr.bf16.mxu0 0
      %486 = vmatmul.mubr.bf16.gmra.mrb[0].mxu0 %v372
      %v487 = vpop.f32.mrb[0].mxu0
      %v488 = vadd.f32 0.0, %v487
      %v489 = vpop.f32.mrb[0].mxu0
      %v490 = vpop.f32.mrb[0].mxu0
      %v491 = vadd.f32 0.0, %v490
      %v492 = vpop.f32.mrb[0].mxu0
      %493 = vmatprep.mubr.bf16.mxu0 0
      %494 = vmatmul.mubr.bf16.gmra.mrb[0].mxu0 %v375
      %v495 = vpop.f32.mrb[0].mxu0
      %v496 = vadd.f32 0.0, %v495
      %v497 = vpop.f32.mrb[0].mxu0
      %v498 = vpop.f32.mrb[0].mxu0
      %v499 = vadd.f32 0.0, %v498
      %v500 = vpop.f32.mrb[0].mxu0
      %501 = vmatprep.mubr.bf16.mxu0 0
      %502 = vmatmul.mubr.bf16.gmra.mrb[0].mxu0 %v378
      %v503 = vpop.f32.mrb[0].mxu0
      %v504 = vadd.f32 0.0, %v503
      %v505 = vpop.f32.mrb[0].mxu0
      %v506 = vpop.f32.mrb[0].mxu0
      %v507 = vadd.f32 0.0, %v506
      %v508 = vpop.f32.mrb[0].mxu0
      %509 = vmatprep.mubr.bf16.mxu0 0
      %510 = vmatmul.mubr.bf16.gmra.mrb[0].mxu0 %v381
      %v511 = vpop.f32.mrb[0].mxu0
      %v512 = vadd.f32 0.0, %v511
      %v513 = vpop.f32.mrb[0].mxu0
      %v514 = vpop.f32.mrb[0].mxu0
      %v515 = vadd.f32 0.0, %v514
      %v516 = vpop.f32.mrb[0].mxu0
      %517 = vmatprep.mubr.bf16.mxu0 0
      %518 = vmatmul.mubr.bf16.gmra.mrb[0].mxu0 %v384
      %v519 = vpop.f32.mrb[0].mxu0
      %v520 = vadd.f32 0.0, %v519
      %v521 = vpop.f32.mrb[0].mxu0
      %v522 = vpop.f32.mrb[0].mxu0
      %v523 = vadd.f32 0.0, %v522
      %v524 = vpop.f32.mrb[0].mxu0
      %525 = vmatprep.mubr.bf16.mxu0 0
      %526 = vmatmul.mubr.bf16.gmra.mrb[0].mxu0 %v387
      %v527 = vpop.f32.mrb[0].mxu0
      %v528 = vadd.f32 0.0, %v527
      %v529 = vpop.f32.mrb[0].mxu0
      %v530 = vpop.f32.mrb[0].mxu0
      %v531 = vadd.f32 0.0, %v530
      %v532 = vpop.f32.mrb[0].mxu0
      %533 = vmatprep.mubr.bf16.mxu0 0
      %534 = vmatmul.mubr.bf16.gmra.mrb[0].mxu0 %v390
      %v535 = vpop.f32.mrb[0].mxu0
      %v536 = vadd.f32 0.0, %v535
      %v537 = vpop.f32.mrb[0].mxu0
      %v538 = vpop.f32.mrb[0].mxu0
      %v539 = vadd.f32 0.0, %v538
      %v540 = vpop.f32.mrb[0].mxu0
      %541 = vmatprep.mubr.bf16.mxu0 0
      %542 = vmatmul.mubr.bf16.gmra.mrb[0].mxu0 %v393
      %v543 = vpop.f32.mrb[0].mxu0
      %v544 = vadd.f32 0.0, %v543
      %v545 = vpop.f32.mrb[0].mxu0
      %v546 = vpop.f32.mrb[0].mxu0
      %v547 = vadd.f32 0.0, %v546
      %v548 = vpop.f32.mrb[0].mxu0
      %549 = vmatprep.mubr.bf16.mxu0 0
      %550 = vmatmul.mubr.bf16.gmra.mrb[0].mxu0 %v396
      %v551 = vpop.f32.mrb[0].mxu0
      %v552 = vadd.f32 0.0, %v551
      %v553 = vpop.f32.mrb[0].mxu0
      %v554 = vpop.f32.mrb[0].mxu0
      %v555 = vadd.f32 0.0, %v554
      %v556 = vpop.f32.mrb[0].mxu0
      %557 = vmatprep.mubr.bf16.mxu0 0
      %558 = vmatmul.mubr.bf16.gmra.mrb[0].mxu0 %v399
      %v559 = vpop.f32.mrb[0].mxu0
      %v560 = vadd.f32 0.0, %v559
      %v561 = vpop.f32.mrb[0].mxu0
      %v562 = vpop.f32.mrb[0].mxu0
      %v563 = vadd.f32 0.0, %v562
      %v564 = vpop.f32.mrb[0].mxu0
      %565 = vdwg.mxu0
      %vm566 = vcmask 64512
      %567 = vst.msk [vmem:[%s194] sm:$0xff] %vm566, %v440
      %568 = vst.msk [vmem:[%s194 + $0x8] sm:$0xff] %vm566, %v443
      %569 = vst.msk [vmem:[%s194 + $0x10] sm:$0xff] %vm566, %v448
      %570 = vst.msk [vmem:[%s194 + $0x18] sm:$0xff] %vm566, %v451
      %571 = vst.msk [vmem:[%s194 + $0x20] sm:$0xff] %vm566, %v456
      %572 = vst.msk [vmem:[%s194 + $0x28] sm:$0xff] %vm566, %v459
      %573 = vst.msk [vmem:[%s194 + $0x30] sm:$0xff] %vm566, %v464
      %574 = vst.msk [vmem:[%s194 + $0x38] sm:$0xff] %vm566, %v467
      %575 = vst.msk [vmem:[%s194 + $0x40] sm:$0xff] %vm566, %v472
      %576 = vst.msk [vmem:[%s194 + $0x48] sm:$0xff] %vm566, %v475
      %577 = vst.msk [vmem:[%s194 + $0x50] sm:$0xff] %vm566, %v480
      %578 = vst.msk [vmem:[%s194 + $0x58] sm:$0xff] %vm566, %v483
      %579 = vst.msk [vmem:[%s194 + $0x60] sm:$0xff] %vm566, %v488
      %580 = vst.msk [vmem:[%s194 + $0x68] sm:$0xff] %vm566, %v491
      %581 = vst.msk [vmem:[%s194 + $0x70] sm:$0xff] %vm566, %v496
      %582 = vst.msk [vmem:[%s194 + $0x78] sm:$0xff] %vm566, %v499
      %583 = vst.msk [vmem:[%s194 + $0x80] sm:$0xff] %vm566, %v504
      %584 = vst.msk [vmem:[%s194 + $0x88] sm:$0xff] %vm566, %v507
      %585 = vst.msk [vmem:[%s194 + $0x90] sm:$0xff] %vm566, %v512
      %586 = vst.msk [vmem:[%s194 + $0x98] sm:$0xff] %vm566, %v515
      %587 = vst.msk [vmem:[%s194 + $0xa0] sm:$0xff] %vm566, %v520
      %588 = vst.msk [vmem:[%s194 + $0xa8] sm:$0xff] %vm566, %v523
      %589 = vst.msk [vmem:[%s194 + $0xb0] sm:$0xff] %vm566, %v528
      %590 = vst.msk [vmem:[%s194 + $0xb8] sm:$0xff] %vm566, %v531
      %591 = vst.msk [vmem:[%s194 + $0xc0] sm:$0xff] %vm566, %v536
      %592 = vst.msk [vmem:[%s194 + $0xc8] sm:$0xff] %vm566, %v539
      %593 = vst.msk [vmem:[%s194 + $0xd0] sm:$0xff] %vm566, %v544
      %594 = vst.msk [vmem:[%s194 + $0xd8] sm:$0xff] %vm566, %v547
      %595 = vst.msk [vmem:[%s194 + $0xe0] sm:$0xff] %vm566, %v552
      %596 = vst.msk [vmem:[%s194 + $0xe8] sm:$0xff] %vm566, %v555
      %597 = vst.msk [vmem:[%s194 + $0xf0] sm:$0xff] %vm566, %v560
      %598 = vst.msk [vmem:[%s194 + $0xf8] sm:$0xff] %vm566, %v563
      %v599 = vld [vmem:[%s3] sm:$0xff]
      %v600 = vsel %vm566, %v440, 0.0
      %v601 = vsel %vm566, %v443, 0.0
      %v602 = vadd.f32 %v600, %v601
      %v603 = vsel %vm566, %v448, 0.0
      %v604 = vadd.f32 %v602, %v603
      %v605 = vsel %vm566, %v451, 0.0
      %v606 = vadd.f32 %v604, %v605
      %v607 = vsel %vm566, %v456, 0.0
      %v608 = vadd.f32 %v606, %v607
      %v609 = vsel %vm566, %v459, 0.0
      %v610 = vadd.f32 %v608, %v609
      %v611 = vsel %vm566, %v464, 0.0
      %v612 = vadd.f32 %v610, %v611
      %v613 = vsel %vm566, %v467, 0.0
      %v614 = vadd.f32 %v612, %v613
      %v615 = vsel %vm566, %v472, 0.0
      %v616 = vadd.f32 %v614, %v615
      %v617 = vsel %vm566, %v475, 0.0
      %v618 = vadd.f32 %v616, %v617
      %v619 = vsel %vm566, %v480, 0.0
      %v620 = vadd.f32 %v618, %v619
      %v621 = vsel %vm566, %v483, 0.0
      %v622 = vadd.f32 %v620, %v621
      %v623 = vsel %vm566, %v488, 0.0
      %v624 = vadd.f32 %v622, %v623
      %v625 = vsel %vm566, %v491, 0.0
      %v626 = vadd.f32 %v624, %v625
      %v627 = vsel %vm566, %v496, 0.0
      %v628 = vadd.f32 %v626, %v627
      %v629 = vsel %vm566, %v499, 0.0
      %v630 = vadd.f32 %v628, %v629
      %v631 = vsel %vm566, %v504, 0.0
      %v632 = vadd.f32 %v630, %v631
      %v633 = vsel %vm566, %v507, 0.0
      %v634 = vadd.f32 %v632, %v633
      %v635 = vsel %vm566, %v512, 0.0
      %v636 = vadd.f32 %v634, %v635
      %v637 = vsel %vm566, %v515, 0.0
      %v638 = vadd.f32 %v636, %v637
      %v639 = vsel %vm566, %v520, 0.0
      %v640 = vadd.f32 %v638, %v639
      %v641 = vsel %vm566, %v523, 0.0
      %v642 = vadd.f32 %v640, %v641
      %v643 = vsel %vm566, %v528, 0.0
      %v644 = vadd.f32 %v642, %v643
      %v645 = vsel %vm566, %v531, 0.0
      %v646 = vadd.f32 %v644, %v645
      %v647 = vsel %vm566, %v536, 0.0
      %v648 = vadd.f32 %v646, %v647
      %v649 = vsel %vm566, %v539, 0.0
      %v650 = vadd.f32 %v648, %v649
      %v651 = vsel %vm566, %v544, 0.0
      %v652 = vadd.f32 %v650, %v651
      %v653 = vsel %vm566, %v547, 0.0
      %v654 = vadd.f32 %v652, %v653
      %v655 = vsel %vm566, %v552, 0.0
      %v656 = vadd.f32 %v654, %v655
      %v657 = vsel %vm566, %v555, 0.0
      %v658 = vadd.f32 %v656, %v657
      %v659 = vsel %vm566, %v560, 0.0
      %v660 = vadd.f32 %v658, %v659
      %v661 = vsel %vm566, %v563, 0.0
      %v662 = vadd.f32 %v660, %v661
      %v663 = vrot.slane %v662, 4
      %v664 = vadd.f32 %v662, %v663
      %v665 = vrot.slane %v664, 2
      %v666 = vadd.f32 %v664, %v665
      %v667 = vrot.slane %v666, 1
      %v668 = vadd.f32 %v666, %v667
      %v669 = vadd.f32 %v599, %v668
      %670 = vst.msk [vmem:[%s3] sm:$0xff] %vm566, %v669
      %v671 = vld [vmem:[%s4] sm:$0xff]
      %v672 = vmul.f32 %v440, %v440
      %v673 = vmul.f32 %v443, %v443
      %v674 = vmul.f32 %v448, %v448
      %v675 = vmul.f32 %v451, %v451
      %v676 = vmul.f32 %v456, %v456
      %v677 = vmul.f32 %v459, %v459
      %v678 = vmul.f32 %v464, %v464
      %v679 = vmul.f32 %v467, %v467
      %v680 = vmul.f32 %v472, %v472
      %v681 = vmul.f32 %v475, %v475
      %v682 = vmul.f32 %v480, %v480
      %v683 = vmul.f32 %v483, %v483
      %v684 = vmul.f32 %v488, %v488
      %v685 = vmul.f32 %v491, %v491
      %v686 = vmul.f32 %v496, %v496
      %v687 = vmul.f32 %v499, %v499
      %v688 = vmul.f32 %v504, %v504
      %v689 = vmul.f32 %v507, %v507
      %v690 = vmul.f32 %v512, %v512
      %v691 = vmul.f32 %v515, %v515
      %v692 = vmul.f32 %v520, %v520
      %v693 = vmul.f32 %v523, %v523
      %v694 = vmul.f32 %v528, %v528
      %v695 = vmul.f32 %v531, %v531
      %v696 = vmul.f32 %v536, %v536
      %v697 = vmul.f32 %v539, %v539
      %v698 = vmul.f32 %v544, %v544
      %v699 = vmul.f32 %v547, %v547
      %v700 = vmul.f32 %v552, %v552
      %v701 = vmul.f32 %v555, %v555
      %v702 = vmul.f32 %v560, %v560
      %v703 = vmul.f32 %v563, %v563
      %v704 = vsel %vm566, %v672, 0.0
      %v705 = vsel %vm566, %v673, 0.0
      %v706 = vadd.f32 %v704, %v705
      %v707 = vsel %vm566, %v674, 0.0
      %v708 = vadd.f32 %v706, %v707
      %v709 = vsel %vm566, %v675, 0.0
      %v710 = vadd.f32 %v708, %v709
      %v711 = vsel %vm566, %v676, 0.0
      %v712 = vadd.f32 %v710, %v711
      %v713 = vsel %vm566, %v677, 0.0
      %v714 = vadd.f32 %v712, %v713
      %v715 = vsel %vm566, %v678, 0.0
      %v716 = vadd.f32 %v714, %v715
      %v717 = vsel %vm566, %v679, 0.0
      %v718 = vadd.f32 %v716, %v717
      %v719 = vsel %vm566, %v680, 0.0
      %v720 = vadd.f32 %v718, %v719
      %v721 = vsel %vm566, %v681, 0.0
      %v722 = vadd.f32 %v720, %v721
      %v723 = vsel %vm566, %v682, 0.0
      %v724 = vadd.f32 %v722, %v723
      %v725 = vsel %vm566, %v683, 0.0
      %v726 = vadd.f32 %v724, %v725
      %v727 = vsel %vm566, %v684, 0.0
      %v728 = vadd.f32 %v726, %v727
      %v729 = vsel %vm566, %v685, 0.0
      %v730 = vadd.f32 %v728, %v729
      %v731 = vsel %vm566, %v686, 0.0
      %v732 = vadd.f32 %v730, %v731
      %v733 = vsel %vm566, %v687, 0.0
      %v734 = vadd.f32 %v732, %v733
      %v735 = vsel %vm566, %v688, 0.0
      %v736 = vadd.f32 %v734, %v735
      %v737 = vsel %vm566, %v689, 0.0
      %v738 = vadd.f32 %v736, %v737
      %v739 = vsel %vm566, %v690, 0.0
      %v740 = vadd.f32 %v738, %v739
      %v741 = vsel %vm566, %v691, 0.0
      %v742 = vadd.f32 %v740, %v741
      %v743 = vsel %vm566, %v692, 0.0
      %v744 = vadd.f32 %v742, %v743
      %v745 = vsel %vm566, %v693, 0.0
      %v746 = vadd.f32 %v744, %v745
      %v747 = vsel %vm566, %v694, 0.0
      %v748 = vadd.f32 %v746, %v747
      %v749 = vsel %vm566, %v695, 0.0
      %v750 = vadd.f32 %v748, %v749
      %v751 = vsel %vm566, %v696, 0.0
      %v752 = vadd.f32 %v750, %v751
      %v753 = vsel %vm566, %v697, 0.0
      %v754 = vadd.f32 %v752, %v753
      %v755 = vsel %vm566, %v698, 0.0
      %v756 = vadd.f32 %v754, %v755
      %v757 = vsel %vm566, %v699, 0.0
      %v758 = vadd.f32 %v756, %v757
      %v759 = vsel %vm566, %v700, 0.0
      %v760 = vadd.f32 %v758, %v759
      %v761 = vsel %vm566, %v701, 0.0
      %v762 = vadd.f32 %v760, %v761
      %v763 = vsel %vm566, %v702, 0.0
      %v764 = vadd.f32 %v762, %v763
      %v765 = vsel %vm566, %v703, 0.0
      %v766 = vadd.f32 %v764, %v765
      %v767 = vrot.slane %v766, 4
      %v768 = vadd.f32 %v766, %v767
      %v769 = vrot.slane %v768, 2
      %v770 = vadd.f32 %v768, %v769
      %v771 = vrot.slane %v770, 1
      %v772 = vadd.f32 %v770, %v771
      %v773 = vadd.f32 %v671, %v772
      %774 = vst.msk [vmem:[%s4] sm:$0xff] %vm566, %v773
      %s775 = smul.u32 32, %s16
      %p776 = scmp.lt.s32.totalorder %s775, 63
      %s777 = scalar_select %p776, %s775, 63
      %s778 = smul.addr %s777, 8
      %s779 = scalar_lea.vmem %s2, %s778
      // Predicated region
      $region33: #{_lambda_.10} parent=27 // pred_check
        %p780 = pneg %p81
      $region34: #{_lambda_.10} parent=27 // pred_check_branch
        %782 = sbr.rel (%p780) target = $region36
      $region35: #{_lambda_.10} parent=27 // pred_region
        %s783 = smul.u32 32, %s16
      $region36: #{_lambda_.10} parent=27 // pred_fallthru
        _
      // Predicated region
      $region37: #{_lambda_.10} parent=27 // pred_check
        %p784 = pneg %p102
      $region38: #{_lambda_.10} parent=27 // pred_check_branch
        %786 = sbr.rel (%p784) target = $region40
      $region39: #{_lambda_.10} parent=27 // pred_region
        _
      $region40: #{_lambda_.10} parent=27 // pred_fallthru
        _
      // Predicated region
      $region41: #{_lambda_.10} parent=27 // pred_check
        %p787 = pneg %p123
      $region42: #{_lambda_.10} parent=27 // pred_check_branch
        %789 = sbr.rel (%p787) target = $region44
      $region43: #{_lambda_.10} parent=27 // pred_region
        _
      $region44: #{_lambda_.10} parent=27 // pred_fallthru
        _
      // Predicated region
      $region45: #{_lambda_.10} parent=27 // pred_check
        %p790 = pneg %p102
      $region46: #{_lambda_.10} parent=27 // pred_check_branch
        %792 = sbr.rel (%p790) target = $region48
      $region47: #{_lambda_.10} parent=27 // pred_region
        _
      $region48: #{_lambda_.10} parent=27 // pred_fallthru
        _
      // Predicated region
      $region49: #{_lambda_.10} parent=27 // pred_check
        %p793 = pneg %p123
      $region50: #{_lambda_.10} parent=27 // pred_check_branch
        %795 = sbr.rel (%p793) target = $region52
      $region51: #{_lambda_.10} parent=27 // pred_region
        _
      $region52: #{_lambda_.10} parent=27 // pred_fallthru
        _
    $region28: #{_lambda_.10} parent=5 // pred_fallthru
      _
    %p796 = scmp.le.s32.totalorder 2, %s11
    // Predicated region
    $region53: #{_lambda_.10} parent=5 // pred_check
      %p797 = pneg %p796
    $region54: #{_lambda_.10} parent=5 // pred_check_branch
      %799 = sbr.rel (%p797) target = $region56
    $region55: #{_lambda_.10} parent=5 // pred_region
      %s800 = ssub.s32 %s11, 2
      // Predicated region
      $region57: #{_lambda_.10} parent=55 // pred_check
        %p801 = pneg %p87
      $region58: #{_lambda_.10} parent=55 // pred_check_branch
        %803 = sbr.rel (%p801) target = $region60
      $region59: #{_lambda_.10} parent=55 // pred_region
        %s804 = smul.u32 32, %s17
        %p805 = scmp.lt.s32.totalorder %s804, 63
        %s806 = scalar_select %p805, %s804, 63
        %s807 = smul.addr %s806, 8
        %s808 = scalar_lea.vmem %s2, %s807
      $region60: #{_lambda_.10} parent=55 // pred_fallthru
        _
    $region56: #{_lambda_.10} parent=5 // pred_fallthru
      _
  $region6: #{_lambda_.10} parent=0 // loop_footer
    %s15 = sadd.s32 1, %s11
  $region7: #{_lambda_.10} parent=0 // loop_footer_branch
    %10 = sbr.rel target = $region3
  $region8: #{_lambda_.10} parent=0 // loop_exit
    _

// kernel: _lambda_.11
$region0: #{_lambda_.11}
  #allocation0 [shape = 'u32[]', space=smem, size = 0x4, offset = 0x4, fixed_abs, tag = 'smem constant byte address 0x4 - core index']
  #allocation1 [shape = 'u32[144,128]{1,0:T(1,128)}', space=vmem, size = 0x12000, scoped, tag = 'internal scratch']
  %s0 = inlined_call_operand.vmem [shape: f32[512,8], index: 0, kind: input, shape index: {}]
  %s1 = inlined_call_operand.vmem [shape: f32[2,8], index: 1, kind: input, shape index: {}]
  %s2 = inlined_call_operand.vmem [shape: bf16[512,4], index: 2, kind: input, shape index: {}]
  %s3 = inlined_call_operand.vmem [shape: bf16[4,8], index: 3, kind: input, shape index: {}]
  %s4 = inlined_call_operand.vmem [shape: f32[1,8], index: 4, kind: input, shape index: {}]
  %s5 = inlined_call_operand.vmem [shape: f32[512,8], index: 5, kind: output, shape index: {}]
  %s6 = sld [smem:[#allocation0]]
  $region53: #{_lambda_.11} parent=0
    _
  %s8 = ssub.s32 1, %s6
  %s9 = scalar_select 0, %s8, %s6
  loop: start=0, step=1, limit=4
  $region2: #{_lambda_.11} parent=0 // loop_pre_header
    _
  $region3: #{_lambda_.11} parent=0 // loop_header
    %s11 = sphi 0, %s15
    %p12 = scmp.ge.s32.totalorder %s11, 4
    %s21 = sphi 0, %s23
    %s24 = sphi 0, %s21
    %s25 = sphi 0, %s24
    %s41 = sphi 0, %s25
    %s45 = sphi 0, %s45
    %s47 = sphi 0, %s45
    %s48 = sphi 0, %s47
    %s62 = sphi 0, %s48
    %s68 = sphi 0, %s70
    %s71 = sphi 0, %s68
    %s72 = sphi 0, %s71
    %s88 = sphi 0, %s72
    %s92 = sphi 0, %s92
    %s94 = sphi 0, %s92
    %s95 = sphi 0, %s94
    %s109 = sphi 0, %s95
    %s113 = sphi 0, %s113
    %s115 = sphi 0, %s113
    %s116 = sphi 0, %s115
    %s130 = sphi 0, %s116
    %s136 = sphi 0, %s138
    %s139 = sphi 0, %s136
    %s140 = sphi 0, %s139
    %s156 = sphi 0, %s140
  $region4: #{_lambda_.11} parent=0 // loop_header_branch
    %14 = sbr.rel (%p12) target = $region8
  $region5: #{_lambda_.11} parent=0 // loop_body
    %s16 = ssub.s32 %s11, 1
    %s17 = ssub.s32 %s11, 2
    %s18 = sadd.s32 %s11, 1
    %s19 = ssub.s32 %s11, %s18
    %p20 = scmp.eq.s32.totalorder %s19, 0
    %s22 = sadd.s32 %s21, 1
    %s23 = scalar_select %p20, %s21, %s22
    %p26 = pneg %p20
    %p27 = scmp.eq.s32.totalorder %s11, 1
    %p28 = por %p26, %p27
    %p29 = scmp.ne.s32.totalorder %s21, %s24
    %p30 = scmp.eq.s32.totalorder %s11, 0
    %p31 = por %p29, %p30
    %p32 = scmp.ne.s32.totalorder %s21, %s24
    %p33 = scmp.eq.s32.totalorder %s16, 1
    %p34 = por %p32, %p33
    %p35 = scmp.ne.s32.totalorder %s24, %s25
    %p36 = scmp.eq.s32.totalorder %s16, 0
    %p37 = por %p35, %p36
    %p38 = scmp.ne.s32.totalorder %s24, %s25
    %p39 = scmp.eq.s32.totalorder %s17, 1
    %p40 = por %p38, %p39
    %p42 = scmp.ne.s32.totalorder %s25, %s41
    %p43 = scmp.eq.s32.totalorder %s17, 0
    %p44 = por %p42, %p43
    %s46 = sadd.s32 %s45, 1
    %p49 = scmp.eq.s32.totalorder %s11, 1
    %p50 = scmp.ne.s32.totalorder %s45, %s47
    %p51 = scmp.eq.s32.totalorder %s11, 0
    %p52 = por %p50, %p51
    %p53 = scmp.ne.s32.totalorder %s45, %s47
    %p54 = scmp.eq.s32.totalorder %s16, 1
    %p55 = por %p53, %p54
    %p56 = scmp.ne.s32.totalorder %s47, %s48
    %p57 = scmp.eq.s32.totalorder %s16, 0
    %p58 = por %p56, %p57
    %p59 = scmp.ne.s32.totalorder %s47, %s48
    %p60 = scmp.eq.s32.totalorder %s17, 1
    %p61 = por %p59, %p60
    %p63 = scmp.ne.s32.totalorder %s48, %s62
    %p64 = scmp.eq.s32.totalorder %s17, 0
    %p65 = por %p63, %p64
    %s66 = ssub.s32 %s11, %s18
    %p67 = scmp.eq.s32.totalorder %s66, 0
    %s69 = sadd.s32 %s68, 1
    %s70 = scalar_select %p67, %s68, %s69
    %p73 = pneg %p67
    %p74 = scmp.eq.s32.totalorder %s11, 1
    %p75 = por %p73, %p74
    %p76 = scmp.ne.s32.totalorder %s68, %s71
    %p77 = scmp.eq.s32.totalorder %s11, 0
    %p78 = por %p76, %p77
    %p79 = scmp.ne.s32.totalorder %s68, %s71
    %p80 = scmp.eq.s32.totalorder %s16, 1
    %p81 = por %p79, %p80
    %p82 = scmp.ne.s32.totalorder %s71, %s72
    %p83 = scmp.eq.s32.totalorder %s16, 0
    %p84 = por %p82, %p83
    %p85 = scmp.ne.s32.totalorder %s71, %s72
    %p86 = scmp.eq.s32.totalorder %s17, 1
    %p87 = por %p85, %p86
    %p89 = scmp.ne.s32.totalorder %s72, %s88
    %p90 = scmp.eq.s32.totalorder %s17, 0
    %p91 = por %p89, %p90
    %s93 = sadd.s32 %s92, 1
    %p96 = scmp.eq.s32.totalorder %s11, 1
    %p97 = scmp.ne.s32.totalorder %s92, %s94
    %p98 = scmp.eq.s32.totalorder %s11, 0
    %p99 = por %p97, %p98
    %p100 = scmp.ne.s32.totalorder %s92, %s94
    %p101 = scmp.eq.s32.totalorder %s16, 1
    %p102 = por %p100, %p101
    %p103 = scmp.ne.s32.totalorder %s94, %s95
    %p104 = scmp.eq.s32.totalorder %s16, 0
    %p105 = por %p103, %p104
    %p106 = scmp.ne.s32.totalorder %s94, %s95
    %p107 = scmp.eq.s32.totalorder %s17, 1
    %p108 = por %p106, %p107
    %p110 = scmp.ne.s32.totalorder %s95, %s109
    %p111 = scmp.eq.s32.totalorder %s17, 0
    %p112 = por %p110, %p111
    %s114 = sadd.s32 %s113, 1
    %p117 = scmp.eq.s32.totalorder %s11, 1
    %p118 = scmp.ne.s32.totalorder %s113, %s115
    %p119 = scmp.eq.s32.totalorder %s11, 0
    %p120 = por %p118, %p119
    %p121 = scmp.ne.s32.totalorder %s113, %s115
    %p122 = scmp.eq.s32.totalorder %s16, 1
    %p123 = por %p121, %p122
    %p124 = scmp.ne.s32.totalorder %s115, %s116
    %p125 = scmp.eq.s32.totalorder %s16, 0
    %p126 = por %p124, %p125
    %p127 = scmp.ne.s32.totalorder %s115, %s116
    %p128 = scmp.eq.s32.totalorder %s17, 1
    %p129 = por %p127, %p128
    %p131 = scmp.ne.s32.totalorder %s116, %s130
    %p132 = scmp.eq.s32.totalorder %s17, 0
    %p133 = por %p131, %p132
    %s134 = ssub.s32 %s11, %s18
    %p135 = scmp.eq.s32.totalorder %s134, 0
    %s137 = sadd.s32 %s136, 1
    %s138 = scalar_select %p135, %s136, %s137
    %p141 = pneg %p135
    %p142 = scmp.eq.s32.totalorder %s11, 1
    %p143 = por %p141, %p142
    %p144 = scmp.ne.s32.totalorder %s136, %s139
    %p145 = scmp.eq.s32.totalorder %s11, 0
    %p146 = por %p144, %p145
    %p147 = scmp.ne.s32.totalorder %s136, %s139
    %p148 = scmp.eq.s32.totalorder %s16, 1
    %p149 = por %p147, %p148
    %p150 = scmp.ne.s32.totalorder %s139, %s140
    %p151 = scmp.eq.s32.totalorder %s16, 0
    %p152 = por %p150, %p151
    %p153 = scmp.ne.s32.totalorder %s139, %s140
    %p154 = scmp.eq.s32.totalorder %s17, 1
    %p155 = por %p153, %p154
    %p157 = scmp.ne.s32.totalorder %s140, %s156
    %p158 = scmp.eq.s32.totalorder %s17, 0
    %p159 = por %p157, %p158
    %p160 = scmp.le.s32.totalorder 1, %s11
    %p161 = scmp.lt.s32.totalorder %s11, 3
    %p162 = pnand %p160, %p161
    %p163 = pneg %p162
    // Predicated region
    $region9: #{_lambda_.11} parent=5 // pred_check
      _
    $region10: #{_lambda_.11} parent=5 // pred_check_branch
      %165 = sbr.rel (%p162) target = $region12
    $region11: #{_lambda_.11} parent=5 // pred_region
      %s166 = ssub.s32 %s11, 1
      // Predicated region
      $region13: #{_lambda_.11} parent=11 // pred_check
        %p167 = pneg %p58
      $region14: #{_lambda_.11} parent=11 // pred_check_branch
        %169 = sbr.rel (%p167) target = $region16
      $region15: #{_lambda_.11} parent=11 // pred_region
        _
      $region16: #{_lambda_.11} parent=11 // pred_fallthru
        _
      // Predicated region
      $region17: #{_lambda_.11} parent=11 // pred_check
        %p170 = pneg %p105
      $region18: #{_lambda_.11} parent=11 // pred_check_branch
        %172 = sbr.rel (%p170) target = $region20
      $region19: #{_lambda_.11} parent=11 // pred_region
        _
      $region20: #{_lambda_.11} parent=11 // pred_fallthru
        _
      // Predicated region
      $region21: #{_lambda_.11} parent=11 // pred_check
        %p173 = pneg %p126
      $region22: #{_lambda_.11} parent=11 // pred_check_branch
        %175 = sbr.rel (%p173) target = $region24
      $region23: #{_lambda_.11} parent=11 // pred_region
        _
      $region24: #{_lambda_.11} parent=11 // pred_fallthru
        _
    $region12: #{_lambda_.11} parent=5 // pred_fallthru
      _
    %p176 = scmp.lt.s32.totalorder %s11, 2
    // Predicated region
    $region25: #{_lambda_.11} parent=5 // pred_check
      %p177 = pneg %p176
    $region26: #{_lambda_.11} parent=5 // pred_check_branch
      %179 = sbr.rel (%p177) target = $region28
    $region27: #{_lambda_.11} parent=5 // pred_region
      // Predicated region
      $region29: #{_lambda_.11} parent=27 // pred_check
        %p180 = pneg %p31
      $region30: #{_lambda_.11} parent=27 // pred_check_branch
        %182 = sbr.rel (%p180) target = $region32
      $region31: #{_lambda_.11} parent=27 // pred_region
        %s183 = smul.u32 32, %s11
        %p184 = scmp.lt.s32.totalorder %s183, 63
        %s185 = scalar_select %p184, %s183, 63
        %s186 = smul.addr %s185, 8
        %s187 = scalar_lea.vmem %s0, %s186
        %s188 = smul.u32 32, %s11
      $region32: #{_lambda_.11} parent=27 // pred_fallthru
        _
      // Predicated region
      $region33: #{_lambda_.11} parent=27 // pred_check
        %p189 = pneg %p78
      $region34: #{_lambda_.11} parent=27 // pred_check_branch
        %191 = sbr.rel (%p189) target = $region36
      $region35: #{_lambda_.11} parent=27 // pred_region
        %s192 = smul.u32 32, %s11
        %p193 = scmp.lt.s32.totalorder %s192, 63
        %s194 = scalar_select %p193, %s192, 63
        %s195 = smul.addr %s194, 4
        %s196 = scalar_lea.vmem %s2, %s195
        %s197 = smul.u32 32, %s11
      $region36: #{_lambda_.11} parent=27 // pred_fallthru
        _
    $region28: #{_lambda_.11} parent=5 // pred_fallthru
      _
    %p198 = scmp.le.s32.totalorder 1, %s11
    %p199 = scmp.lt.s32.totalorder %s11, 3
    %p200 = pnand %p198, %p199
    %p201 = pneg %p200
    // Predicated region
    $region37: #{_lambda_.11} parent=5 // pred_check
      _
    $region38: #{_lambda_.11} parent=5 // pred_check_branch
      %203 = sbr.rel (%p200) target = $region40
    $region39: #{_lambda_.11} parent=5 // pred_region
      %s204 = ssub.s32 %s11, 1
      %s205 = smul.u32 32, %s16
      %p206 = scmp.lt.s32.totalorder %s205, 63
      %s207 = scalar_select %p206, %s205, 63
      %s208 = smul.addr %s207, 8
      %s209 = scalar_lea.vmem %s0, %s208
      %p210 = pneg %p37
      %p211 = pneg %p34
      %p212 = pneg %p58
      %p213 = pneg %p55
      %s214 = smul.u32 32, %s16
      %p215 = scmp.lt.s32.totalorder %s214, 63
      %s216 = scalar_select %p215, %s214, 63
      %s217 = smul.addr %s216, 4
      %s218 = scalar_lea.vmem %s2, %s217
      %p219 = pneg %p84
      %p220 = pneg %p81
      %p221 = pneg %p105
      %p222 = pneg %p102
      %p223 = pneg %p126
      %p224 = pneg %p123
      %p225 = pneg %p152
      %p226 = pneg %p149
      %s227 = smul.u32 32, %s16
      %p228 = scmp.lt.s32.totalorder %s227, 63
      %s229 = scalar_select %p228, %s227, 63
      %s230 = smul.addr %s229, 8
      %s231 = scalar_lea.vmem %s5, %s230
      %s232 = smul.u32 32, %s16
      %p233 = scmp.lt.s32.totalorder %s232, 63
      %s234 = scalar_select %p233, %s232, 63
      %s235 = smul.addr %s234, 8
      %s236 = scalar_lea.vmem %s0, %s235
      %s237 = smul.u32 32, %s16
      %s238 = smul.u32 32, %s16
      %p239 = scmp.lt.s32.totalorder %s238, 63
      %s240 = scalar_select %p239, %s238, 63
      %s241 = smul.addr %s240, 4
      %s242 = scalar_lea.vmem %s2, %s241
      %s243 = smul.u32 32, %s16
      %s244 = smul.u32 32, %s16
      %p245 = scmp.lt.s32.totalorder %s244, 63
      %s246 = scalar_select %p245, %s244, 63
      %s247 = smul.addr %s246, 8
      %s248 = scalar_lea.vmem %s5, %s247
      %s249 = smul.u32 32, %s16
      %v251 = vld [vmem:[%s236] sm:$0xff]
      %v252 = vld [vmem:[%s236 + $0x8] sm:$0xff]
      %v253 = vld [vmem:[%s236 + $0x10] sm:$0xff]
      %v254 = vld [vmem:[%s236 + $0x18] sm:$0xff]
      %v255 = vld [vmem:[%s236 + $0x20] sm:$0xff]
      %v256 = vld [vmem:[%s236 + $0x28] sm:$0xff]
      %v257 = vld [vmem:[%s236 + $0x30] sm:$0xff]
      %v258 = vld [vmem:[%s236 + $0x38] sm:$0xff]
      %v259 = vld [vmem:[%s236 + $0x40] sm:$0xff]
      %v260 = vld [vmem:[%s236 + $0x48] sm:$0xff]
      %v261 = vld [vmem:[%s236 + $0x50] sm:$0xff]
      %v262 = vld [vmem:[%s236 + $0x58] sm:$0xff]
      %v263 = vld [vmem:[%s236 + $0x60] sm:$0xff]
      %v264 = vld [vmem:[%s236 + $0x68] sm:$0xff]
      %v265 = vld [vmem:[%s236 + $0x70] sm:$0xff]
      %v266 = vld [vmem:[%s236 + $0x78] sm:$0xff]
      %v267 = vld [vmem:[%s236 + $0x80] sm:$0xff]
      %v268 = vld [vmem:[%s236 + $0x88] sm:$0xff]
      %v269 = vld [vmem:[%s236 + $0x90] sm:$0xff]
      %v270 = vld [vmem:[%s236 + $0x98] sm:$0xff]
      %v271 = vld [vmem:[%s236 + $0xa0] sm:$0xff]
      %v272 = vld [vmem:[%s236 + $0xa8] sm:$0xff]
      %v273 = vld [vmem:[%s236 + $0xb0] sm:$0xff]
      %v274 = vld [vmem:[%s236 + $0xb8] sm:$0xff]
      %v275 = vld [vmem:[%s236 + $0xc0] sm:$0xff]
      %v276 = vld [vmem:[%s236 + $0xc8] sm:$0xff]
      %v277 = vld [vmem:[%s236 + $0xd0] sm:$0xff]
      %v278 = vld [vmem:[%s236 + $0xd8] sm:$0xff]
      %v279 = vld [vmem:[%s236 + $0xe0] sm:$0xff]
      %v280 = vld [vmem:[%s236 + $0xe8] sm:$0xff]
      %v281 = vld [vmem:[%s236 + $0xf0] sm:$0xff]
      %v282 = vld [vmem:[%s236 + $0xf8] sm:$0xff]
      %v283 = vld [vmem:[%s1] sm:$0x1]
      %v284 = vlaneseq
      %v285 = vshrl.u32 %v284, 7
      %v286 = vsub.s32 0, %v285
      %v287 = vrot.slane %v283, %v286
      %v288 = vmul.f32 %v251, %v287
      %v289 = vmul.f32 %v252, %v287
      %v290 = vmul.f32 %v253, %v287
      %v291 = vmul.f32 %v254, %v287
      %v292 = vmul.f32 %v255, %v287
      %v293 = vmul.f32 %v256, %v287
      %v294 = vmul.f32 %v257, %v287
      %v295 = vmul.f32 %v258, %v287
      %v296 = vmul.f32 %v259, %v287
      %v297 = vmul.f32 %v260, %v287
      %v298 = vmul.f32 %v261, %v287
      %v299 = vmul.f32 %v262, %v287
      %v300 = vmul.f32 %v263, %v287
      %v301 = vmul.f32 %v264, %v287
      %v302 = vmul.f32 %v265, %v287
      %v303 = vmul.f32 %v266, %v287
      %v304 = vmul.f32 %v267, %v287
      %v305 = vmul.f32 %v268, %v287
      %v306 = vmul.f32 %v269, %v287
      %v307 = vmul.f32 %v270, %v287
      %v308 = vmul.f32 %v271, %v287
      %v309 = vmul.f32 %v272, %v287
      %v310 = vmul.f32 %v273, %v287
      %v311 = vmul.f32 %v274, %v287
      %v312 = vmul.f32 %v275, %v287
      %v313 = vmul.f32 %v276, %v287
      %v314 = vmul.f32 %v277, %v287
      %v315 = vmul.f32 %v278, %v287
      %v316 = vmul.f32 %v279, %v287
      %v317 = vmul.f32 %v280, %v287
      %v318 = vmul.f32 %v281, %v287
      %v319 = vmul.f32 %v282, %v287
      %v320 = vld [vmem:[%s1 + $0x1] sm:$0x1]
      %v321 = vlaneseq
      %v322 = vshrl.u32 %v321, 7
      %v323 = vsub.s32 0, %v322
      %v324 = vrot.slane %v320, %v323
      %v325 = vadd.f32 %v288, %v324
      %v326 = vadd.f32 %v289, %v324
      %v327 = vadd.f32 %v290, %v324
      %v328 = vadd.f32 %v291, %v324
      %v329 = vadd.f32 %v292, %v324
      %v330 = vadd.f32 %v293, %v324
      %v331 = vadd.f32 %v294, %v324
      %v332 = vadd.f32 %v295, %v324
      %v333 = vadd.f32 %v296, %v324
      %v334 = vadd.f32 %v297, %v324
      %v335 = vadd.f32 %v298, %v324
      %v336 = vadd.f32 %v299, %v324
      %v337 = vadd.f32 %v300, %v324
      %v338 = vadd.f32 %v301, %v324
      %v339 = vadd.f32 %v302, %v324
      %v340 = vadd.f32 %v303, %v324
      %v341 = vadd.f32 %v304, %v324
      %v342 = vadd.f32 %v305, %v324
      %v343 = vadd.f32 %v306, %v324
      %v344 = vadd.f32 %v307, %v324
      %v345 = vadd.f32 %v308, %v324
      %v346 = vadd.f32 %v309, %v324
      %v347 = vadd.f32 %v310, %v324
      %v348 = vadd.f32 %v311, %v324
      %v349 = vadd.f32 %v312, %v324
      %v350 = vadd.f32 %v313, %v324
      %v351 = vadd.f32 %v314, %v324
      %v352 = vadd.f32 %v315, %v324
      %v353 = vadd.f32 %v316, %v324
      %v354 = vadd.f32 %v317, %v324
      %v355 = vadd.f32 %v318, %v324
      %v356 = vadd.f32 %v319, %v324
      %v357 = vmax.f32 %v325, 0.0
      %v358 = vmax.f32 %v326, 0.0
      %v359 = vmax.f32 %v327, 0.0
      %v360 = vmax.f32 %v328, 0.0
      %v361 = vmax.f32 %v329, 0.0
      %v362 = vmax.f32 %v330, 0.0
      %v363 = vmax.f32 %v331, 0.0
      %v364 = vmax.f32 %v332, 0.0
      %v365 = vmax.f32 %v333, 0.0
      %v366 = vmax.f32 %v334, 0.0
      %v367 = vmax.f32 %v335, 0.0
      %v368 = vmax.f32 %v336, 0.0
      %v369 = vmax.f32 %v337, 0.0
      %v370 = vmax.f32 %v338, 0.0
      %v371 = vmax.f32 %v339, 0.0
      %v372 = vmax.f32 %v340, 0.0
      %v373 = vmax.f32 %v341, 0.0
      %v374 = vmax.f32 %v342, 0.0
      %v375 = vmax.f32 %v343, 0.0
      %v376 = vmax.f32 %v344, 0.0
      %v377 = vmax.f32 %v345, 0.0
      %v378 = vmax.f32 %v346, 0.0
      %v379 = vmax.f32 %v347, 0.0
      %v380 = vmax.f32 %v348, 0.0
      %v381 = vmax.f32 %v349, 0.0
      %v382 = vmax.f32 %v350, 0.0
      %v383 = vmax.f32 %v351, 0.0
      %v384 = vmax.f32 %v352, 0.0
      %v385 = vmax.f32 %v353, 0.0
      %v386 = vmax.f32 %v354, 0.0
      %v387 = vmax.f32 %v355, 0.0
      %v388 = vmax.f32 %v356, 0.0
      %v389 = vld [vmem:[%s242] sm:$0xf]
      %v390 = vld [vmem:[%s242 + $0x4] sm:$0xf]
      %v391 = vld [vmem:[%s242 + $0x8] sm:$0xf]
      %v392 = vld [vmem:[%s242 + $0xc] sm:$0xf]
      %v393 = vld [vmem:[%s242 + $0x10] sm:$0xf]
      %v394 = vld [vmem:[%s242 + $0x14] sm:$0xf]
      %v395 = vld [vmem:[%s242 + $0x18] sm:$0xf]
      %v396 = vld [vmem:[%s242 + $0x1c] sm:$0xf]
      %v397 = vld [vmem:[%s242 + $0x20] sm:$0xf]
      %v398 = vld [vmem:[%s242 + $0x24] sm:$0xf]
      %v399 = vld [vmem:[%s242 + $0x28] sm:$0xf]
      %v400 = vld [vmem:[%s242 + $0x2c] sm:$0xf]
      %v401 = vld [vmem:[%s242 + $0x30] sm:$0xf]
      %v402 = vld [vmem:[%s242 + $0x34] sm:$0xf]
      %v403 = vld [vmem:[%s242 + $0x38] sm:$0xf]
      %v404 = vld [vmem:[%s242 + $0x3c] sm:$0xf]
      %v405 = vld [vmem:[%s242 + $0x40] sm:$0xf]
      %v406 = vld [vmem:[%s242 + $0x44] sm:$0xf]
      %v407 = vld [vmem:[%s242 + $0x48] sm:$0xf]
      %v408 = vld [vmem:[%s242 + $0x4c] sm:$0xf]
      %v409 = vld [vmem:[%s242 + $0x50] sm:$0xf]
      %v410 = vld [vmem:[%s242 + $0x54] sm:$0xf]
      %v411 = vld [vmem:[%s242 + $0x58] sm:$0xf]
      %v412 = vld [vmem:[%s242 + $0x5c] sm:$0xf]
      %v413 = vld [vmem:[%s242 + $0x60] sm:$0xf]
      %v414 = vld [vmem:[%s242 + $0x64] sm:$0xf]
      %v415 = vld [vmem:[%s242 + $0x68] sm:$0xf]
      %v416 = vld [vmem:[%s242 + $0x6c] sm:$0xf]
      %v417 = vld [vmem:[%s242 + $0x70] sm:$0xf]
      %v418 = vld [vmem:[%s242 + $0x74] sm:$0xf]
      %v419 = vld [vmem:[%s242 + $0x78] sm:$0xf]
      %v420 = vld [vmem:[%s242 + $0x7c] sm:$0xf]
      %v421 = vld [vmem:[%s3] sm:$0x3]
      %v454 = vunpack.c.l.b16 %v389
      %v455 = vunpack.c.l.b16 %v390
      %v456 = vunpack.c.l.b16 %v391
      %v457 = vunpack.c.l.b16 %v392
      %v458 = vunpack.c.l.b16 %v393
      %v459 = vunpack.c.l.b16 %v394
      %v460 = vunpack.c.l.b16 %v395
      %v461 = vunpack.c.l.b16 %v396
      %v462 = vunpack.c.l.b16 %v397
      %v463 = vunpack.c.l.b16 %v398
      %v464 = vunpack.c.l.b16 %v399
      %v465 = vunpack.c.l.b16 %v400
      %v466 = vunpack.c.l.b16 %v401
      %v467 = vunpack.c.l.b16 %v402
      %v468 = vunpack.c.l.b16 %v403
      %v469 = vunpack.c.l.b16 %v404
      %v470 = vunpack.c.l.b16 %v405
      %v471 = vunpack.c.l.b16 %v406
      %v472 = vunpack.c.l.b16 %v407
      %v473 = vunpack.c.l.b16 %v408
      %v474 = vunpack.c.l.b16 %v409
      %v475 = vunpack.c.l.b16 %v410
      %v476 = vunpack.c.l.b16 %v411
      %v477 = vunpack.c.l.b16 %v412
      %v478 = vunpack.c.l.b16 %v413
      %v479 = vunpack.c.l.b16 %v414
      %v480 = vunpack.c.l.b16 %v415
      %v481 = vunpack.c.l.b16 %v416
      %v482 = vunpack.c.l.b16 %v417
      %v483 = vunpack.c.l.b16 %v418
      %v484 = vunpack.c.l.b16 %v419
      %v485 = vunpack.c.l.b16 %v420
      %v486 = vpack.c.b16 %v455, %v454
      %v487 = vpack.c.b16 %v457, %v456
      %v488 = vpack.c.b16 %v459, %v458
      %v489 = vpack.c.b16 %v461, %v460
      %v490 = vpack.c.b16 %v463, %v462
      %v491 = vpack.c.b16 %v465, %v464
      %v492 = vpack.c.b16 %v467, %v466
      %v493 = vpack.c.b16 %v469, %v468
      %v494 = vpack.c.b16 %v471, %v470
      %v495 = vpack.c.b16 %v473, %v472
      %v496 = vpack.c.b16 %v475, %v474
      %v497 = vpack.c.b16 %v477, %v476
      %v498 = vpack.c.b16 %v479, %v478
      %v499 = vpack.c.b16 %v481, %v480
      %v500 = vpack.c.b16 %v483, %v482
      %v501 = vpack.c.b16 %v485, %v484
      %vm502 = vcmask 31744
      %v504 = vsel %vm502, %v486, 0
      %v507 = vsel %vm502, %v487, 0
      %v510 = vsel %vm502, %v488, 0
      %v513 = vsel %vm502, %v489, 0
      %v516 = vsel %vm502, %v490, 0
      %v519 = vsel %vm502, %v491, 0
      %v522 = vsel %vm502, %v492, 0
      %v525 = vsel %vm502, %v493, 0
      %v528 = vsel %vm502, %v494, 0
      %v531 = vsel %vm502, %v495, 0
      %v534 = vsel %vm502, %v496, 0
      %v537 = vsel %vm502, %v497, 0
      %v540 = vsel %vm502, %v498, 0
      %v543 = vsel %vm502, %v499, 0
      %v546 = vsel %vm502, %v500, 0
      %v549 = vsel %vm502, %v501, 0
      %vm551 = vcmask 1041408
      %v553 = vsel %vm551, %v421, 0
      %555 = vmatprep.subr.bf16.mxu0 0
      %556 = vmatpush1.bf16.msra.mxu0 %v553
      %557 = vmatprep.subr.bf16.mxu0 0
      %558 = vmatpush1.bf16.msra.mxu0 0
      %559 = vmatprep.subr.bf16.mxu0 0
      %560 = vmatpush1.bf16.msra.mxu0 0
      %561 = vmatprep.subr.bf16.mxu0 0
      %562 = vmatpush1.bf16.msra.mxu0 0
      %563 = vmatprep.subr.bf16.mxu0 0
      %564 = vmatpush1.bf16.msra.mxu0 0
      %565 = vmatprep.subr.bf16.mxu0 0
      %566 = vmatpush1.bf16.msra.mxu0 0
      %567 = vmatprep.subr.bf16.mxu0 0
      %568 = vmatpush1.bf16.msra.mxu0 0
      %569 = vmatprep.subr.bf16.mxu0 0
      %570 = vmatpush1.bf16.msra.mxu0 0
      %571 = vmatprep.subr.bf16.mxu0 0
      %572 = vmatpush1.bf16.msra.mxu0 0
      %573 = vmatprep.subr.bf16.mxu0 0
      %574 = vmatpush1.bf16.msra.mxu0 0
      %575 = vmatprep.subr.bf16.mxu0 0
      %576 = vmatpush1.bf16.msra.mxu0 0
      %577 = vmatprep.subr.bf16.mxu0 0
      %578 = vmatpush1.bf16.msra.mxu0 0
      %579 = vmatprep.subr.bf16.mxu0 0
      %580 = vmatpush1.bf16.msra.mxu0 0
      %581 = vmatprep.subr.bf16.mxu0 0
      %582 = vmatpush1.bf16.msra.mxu0 0
      %583 = vmatprep.subr.bf16.mxu0 0
      %584 = vmatpush1.bf16.msra.mxu0 0
      %585 = vmatprep.subr.bf16.mxu0 0
      %586 = vmatpush1.bf16.msra.mxu0 0
      %587 = vmatprep.mubr.bf16.mxu0 0
      %588 = vmatmul.mubr.bf16.gmra.mrb[0].mxu0 %v504
      %v589 = vpop.f32.mrb[0].mxu0
      %v590 = vadd.f32 0.0, %v589
      %v591 = vpop.f32.mrb[0].mxu0
      %v592 = vpop.f32.mrb[0].mxu0
      %v593 = vadd.f32 0.0, %v592
      %v594 = vpop.f32.mrb[0].mxu0
      %595 = vmatprep.mubr.bf16.mxu0 0
      %596 = vmatmul.mubr.bf16.gmra.mrb[0].mxu0 %v507
      %v597 = vpop.f32.mrb[0].mxu0
      %v598 = vadd.f32 0.0, %v597
      %v599 = vpop.f32.mrb[0].mxu0
      %v600 = vpop.f32.mrb[0].mxu0
      %v601 = vadd.f32 0.0, %v600
      %v602 = vpop.f32.mrb[0].mxu0
      %603 = vmatprep.mubr.bf16.mxu0 0
      %604 = vmatmul.mubr.bf16.gmra.mrb[0].mxu0 %v510
      %v605 = vpop.f32.mrb[0].mxu0
      %v606 = vadd.f32 0.0, %v605
      %v607 = vpop.f32.mrb[0].mxu0
      %v608 = vpop.f32.mrb[0].mxu0
      %v609 = vadd.f32 0.0, %v608
      %v610 = vpop.f32.mrb[0].mxu0
      %611 = vmatprep.mubr.bf16.mxu0 0
      %612 = vmatmul.mubr.bf16.gmra.mrb[0].mxu0 %v513
      %v613 = vpop.f32.mrb[0].mxu0
      %v614 = vadd.f32 0.0, %v613
      %v615 = vpop.f32.mrb[0].mxu0
      %v616 = vpop.f32.mrb[0].mxu0
      %v617 = vadd.f32 0.0, %v616
      %v618 = vpop.f32.mrb[0].mxu0
      %619 = vmatprep.mubr.bf16.mxu0 0
      %620 = vmatmul.mubr.bf16.gmra.mrb[0].mxu0 %v516
      %v621 = vpop.f32.mrb[0].mxu0
      %v622 = vadd.f32 0.0, %v621
      %v623 = vpop.f32.mrb[0].mxu0
      %v624 = vpop.f32.mrb[0].mxu0
      %v625 = vadd.f32 0.0, %v624
      %v626 = vpop.f32.mrb[0].mxu0
      %627 = vmatprep.mubr.bf16.mxu0 0
      %628 = vmatmul.mubr.bf16.gmra.mrb[0].mxu0 %v519
      %v629 = vpop.f32.mrb[0].mxu0
      %v630 = vadd.f32 0.0, %v629
      %v631 = vpop.f32.mrb[0].mxu0
      %v632 = vpop.f32.mrb[0].mxu0
      %v633 = vadd.f32 0.0, %v632
      %v634 = vpop.f32.mrb[0].mxu0
      %635 = vmatprep.mubr.bf16.mxu0 0
      %636 = vmatmul.mubr.bf16.gmra.mrb[0].mxu0 %v522
      %v637 = vpop.f32.mrb[0].mxu0
      %v638 = vadd.f32 0.0, %v637
      %v639 = vpop.f32.mrb[0].mxu0
      %v640 = vpop.f32.mrb[0].mxu0
      %v641 = vadd.f32 0.0, %v640
      %v642 = vpop.f32.mrb[0].mxu0
      %643 = vmatprep.mubr.bf16.mxu0 0
      %644 = vmatmul.mubr.bf16.gmra.mrb[0].mxu0 %v525
      %v645 = vpop.f32.mrb[0].mxu0
      %v646 = vadd.f32 0.0, %v645
      %v647 = vpop.f32.mrb[0].mxu0
      %v648 = vpop.f32.mrb[0].mxu0
      %v649 = vadd.f32 0.0, %v648
      %v650 = vpop.f32.mrb[0].mxu0
      %651 = vmatprep.mubr.bf16.mxu0 0
      %652 = vmatmul.mubr.bf16.gmra.mrb[0].mxu0 %v528
      %v653 = vpop.f32.mrb[0].mxu0
      %v654 = vadd.f32 0.0, %v653
      %v655 = vpop.f32.mrb[0].mxu0
      %v656 = vpop.f32.mrb[0].mxu0
      %v657 = vadd.f32 0.0, %v656
      %v658 = vpop.f32.mrb[0].mxu0
      %659 = vmatprep.mubr.bf16.mxu0 0
      %660 = vmatmul.mubr.bf16.gmra.mrb[0].mxu0 %v531
      %v661 = vpop.f32.mrb[0].mxu0
      %v662 = vadd.f32 0.0, %v661
      %v663 = vpop.f32.mrb[0].mxu0
      %v664 = vpop.f32.mrb[0].mxu0
      %v665 = vadd.f32 0.0, %v664
      %v666 = vpop.f32.mrb[0].mxu0
      %667 = vmatprep.mubr.bf16.mxu0 0
      %668 = vmatmul.mubr.bf16.gmra.mrb[0].mxu0 %v534
      %v669 = vpop.f32.mrb[0].mxu0
      %v670 = vadd.f32 0.0, %v669
      %v671 = vpop.f32.mrb[0].mxu0
      %v672 = vpop.f32.mrb[0].mxu0
      %v673 = vadd.f32 0.0, %v672
      %v674 = vpop.f32.mrb[0].mxu0
      %675 = vmatprep.mubr.bf16.mxu0 0
      %676 = vmatmul.mubr.bf16.gmra.mrb[0].mxu0 %v537
      %v677 = vpop.f32.mrb[0].mxu0
      %v678 = vadd.f32 0.0, %v677
      %v679 = vpop.f32.mrb[0].mxu0
      %v680 = vpop.f32.mrb[0].mxu0
      %v681 = vadd.f32 0.0, %v680
      %v682 = vpop.f32.mrb[0].mxu0
      %683 = vmatprep.mubr.bf16.mxu0 0
      %684 = vmatmul.mubr.bf16.gmra.mrb[0].mxu0 %v540
      %v685 = vpop.f32.mrb[0].mxu0
      %v686 = vadd.f32 0.0, %v685
      %v687 = vpop.f32.mrb[0].mxu0
      %v688 = vpop.f32.mrb[0].mxu0
      %v689 = vadd.f32 0.0, %v688
      %v690 = vpop.f32.mrb[0].mxu0
      %691 = vmatprep.mubr.bf16.mxu0 0
      %692 = vmatmul.mubr.bf16.gmra.mrb[0].mxu0 %v543
      %v693 = vpop.f32.mrb[0].mxu0
      %v694 = vadd.f32 0.0, %v693
      %v695 = vpop.f32.mrb[0].mxu0
      %v696 = vpop.f32.mrb[0].mxu0
      %v697 = vadd.f32 0.0, %v696
      %v698 = vpop.f32.mrb[0].mxu0
      %699 = vmatprep.mubr.bf16.mxu0 0
      %700 = vmatmul.mubr.bf16.gmra.mrb[0].mxu0 %v546
      %v701 = vpop.f32.mrb[0].mxu0
      %v702 = vadd.f32 0.0, %v701
      %v703 = vpop.f32.mrb[0].mxu0
      %v704 = vpop.f32.mrb[0].mxu0
      %v705 = vadd.f32 0.0, %v704
      %v706 = vpop.f32.mrb[0].mxu0
      %707 = vmatprep.mubr.bf16.mxu0 0
      %708 = vmatmul.mubr.bf16.gmra.mrb[0].mxu0 %v549
      %v709 = vpop.f32.mrb[0].mxu0
      %v710 = vadd.f32 0.0, %v709
      %v711 = vpop.f32.mrb[0].mxu0
      %v712 = vpop.f32.mrb[0].mxu0
      %v713 = vadd.f32 0.0, %v712
      %v714 = vpop.f32.mrb[0].mxu0
      %715 = vdwg.mxu0
      %v716 = vadd.f32 %v357, %v590
      %v717 = vadd.f32 %v358, %v593
      %v718 = vadd.f32 %v359, %v598
      %v719 = vadd.f32 %v360, %v601
      %v720 = vadd.f32 %v361, %v606
      %v721 = vadd.f32 %v362, %v609
      %v722 = vadd.f32 %v363, %v614
      %v723 = vadd.f32 %v364, %v617
      %v724 = vadd.f32 %v365, %v622
      %v725 = vadd.f32 %v366, %v625
      %v726 = vadd.f32 %v367, %v630
      %v727 = vadd.f32 %v368, %v633
      %v728 = vadd.f32 %v369, %v638
      %v729 = vadd.f32 %v370, %v641
      %v730 = vadd.f32 %v371, %v646
      %v731 = vadd.f32 %v372, %v649
      %v732 = vadd.f32 %v373, %v654
      %v733 = vadd.f32 %v374, %v657
      %v734 = vadd.f32 %v375, %v662
      %v735 = vadd.f32 %v376, %v665
      %v736 = vadd.f32 %v377, %v670
      %v737 = vadd.f32 %v378, %v673
      %v738 = vadd.f32 %v379, %v678
      %v739 = vadd.f32 %v380, %v681
      %v740 = vadd.f32 %v381, %v686
      %v741 = vadd.f32 %v382, %v689
      %v742 = vadd.f32 %v383, %v694
      %v743 = vadd.f32 %v384, %v697
      %v744 = vadd.f32 %v385, %v702
      %v745 = vadd.f32 %v386, %v705
      %v746 = vadd.f32 %v387, %v710
      %v747 = vadd.f32 %v388, %v713
      %v748 = vld [vmem:[%s4] sm:$0x1]
      %v750 = vlaneseq
      %v751 = vshrl.u32 %v750, 7
      %v752 = vsub.s32 0, %v751
      %v753 = vrot.slane %v748, %v752
      %v755 = vadd.f32 %v716, %v753
      %v756 = vadd.f32 %v717, %v753
      %v757 = vadd.f32 %v718, %v753
      %v758 = vadd.f32 %v719, %v753
      %v759 = vadd.f32 %v720, %v753
      %v760 = vadd.f32 %v721, %v753
      %v761 = vadd.f32 %v722, %v753
      %v762 = vadd.f32 %v723, %v753
      %v763 = vadd.f32 %v724, %v753
      %v764 = vadd.f32 %v725, %v753
      %v765 = vadd.f32 %v726, %v753
      %v766 = vadd.f32 %v727, %v753
      %v767 = vadd.f32 %v728, %v753
      %v768 = vadd.f32 %v729, %v753
      %v769 = vadd.f32 %v730, %v753
      %v770 = vadd.f32 %v731, %v753
      %v771 = vadd.f32 %v732, %v753
      %v772 = vadd.f32 %v733, %v753
      %v773 = vadd.f32 %v734, %v753
      %v774 = vadd.f32 %v735, %v753
      %v775 = vadd.f32 %v736, %v753
      %v776 = vadd.f32 %v737, %v753
      %v777 = vadd.f32 %v738, %v753
      %v778 = vadd.f32 %v739, %v753
      %v779 = vadd.f32 %v740, %v753
      %v780 = vadd.f32 %v741, %v753
      %v781 = vadd.f32 %v742, %v753
      %v782 = vadd.f32 %v743, %v753
      %v783 = vadd.f32 %v744, %v753
      %v784 = vadd.f32 %v745, %v753
      %v785 = vadd.f32 %v746, %v753
      %v786 = vadd.f32 %v747, %v753
      %vm787 = vcmask 64512
      %788 = vst.msk [vmem:[%s248] sm:$0xff] %vm787, %v755
      %789 = vst.msk [vmem:[%s248 + $0x8] sm:$0xff] %vm787, %v756
      %790 = vst.msk [vmem:[%s248 + $0x10] sm:$0xff] %vm787, %v757
      %791 = vst.msk [vmem:[%s248 + $0x18] sm:$0xff] %vm787, %v758
      %792 = vst.msk [vmem:[%s248 + $0x20] sm:$0xff] %vm787, %v759
      %793 = vst.msk [vmem:[%s248 + $0x28] sm:$0xff] %vm787, %v760
      %794 = vst.msk [vmem:[%s248 + $0x30] sm:$0xff] %vm787, %v761
      %795 = vst.msk [vmem:[%s248 + $0x38] sm:$0xff] %vm787, %v762
      %796 = vst.msk [vmem:[%s248 + $0x40] sm:$0xff] %vm787, %v763
      %797 = vst.msk [vmem:[%s248 + $0x48] sm:$0xff] %vm787, %v764
      %798 = vst.msk [vmem:[%s248 + $0x50] sm:$0xff] %vm787, %v765
      %799 = vst.msk [vmem:[%s248 + $0x58] sm:$0xff] %vm787, %v766
      %800 = vst.msk [vmem:[%s248 + $0x60] sm:$0xff] %vm787, %v767
      %801 = vst.msk [vmem:[%s248 + $0x68] sm:$0xff] %vm787, %v768
      %802 = vst.msk [vmem:[%s248 + $0x70] sm:$0xff] %vm787, %v769
      %803 = vst.msk [vmem:[%s248 + $0x78] sm:$0xff] %vm787, %v770
      %804 = vst.msk [vmem:[%s248 + $0x80] sm:$0xff] %vm787, %v771
      %805 = vst.msk [vmem:[%s248 + $0x88] sm:$0xff] %vm787, %v772
      %806 = vst.msk [vmem:[%s248 + $0x90] sm:$0xff] %vm787, %v773
      %807 = vst.msk [vmem:[%s248 + $0x98] sm:$0xff] %vm787, %v774
      %808 = vst.msk [vmem:[%s248 + $0xa0] sm:$0xff] %vm787, %v775
      %809 = vst.msk [vmem:[%s248 + $0xa8] sm:$0xff] %vm787, %v776
      %810 = vst.msk [vmem:[%s248 + $0xb0] sm:$0xff] %vm787, %v777
      %811 = vst.msk [vmem:[%s248 + $0xb8] sm:$0xff] %vm787, %v778
      %812 = vst.msk [vmem:[%s248 + $0xc0] sm:$0xff] %vm787, %v779
      %813 = vst.msk [vmem:[%s248 + $0xc8] sm:$0xff] %vm787, %v780
      %814 = vst.msk [vmem:[%s248 + $0xd0] sm:$0xff] %vm787, %v781
      %815 = vst.msk [vmem:[%s248 + $0xd8] sm:$0xff] %vm787, %v782
      %816 = vst.msk [vmem:[%s248 + $0xe0] sm:$0xff] %vm787, %v783
      %817 = vst.msk [vmem:[%s248 + $0xe8] sm:$0xff] %vm787, %v784
      %818 = vst.msk [vmem:[%s248 + $0xf0] sm:$0xff] %vm787, %v785
      %819 = vst.msk [vmem:[%s248 + $0xf8] sm:$0xff] %vm787, %v786
      %s820 = smul.u32 32, %s16
      %p821 = scmp.lt.s32.totalorder %s820, 63
      %s822 = scalar_select %p821, %s820, 63
      %s823 = smul.addr %s822, 8
      %s824 = scalar_lea.vmem %s5, %s823
      // Predicated region
      $region41: #{_lambda_.11} parent=39 // pred_check
        %p825 = pneg %p149
      $region42: #{_lambda_.11} parent=39 // pred_check_branch
        %827 = sbr.rel (%p825) target = $region44
      $region43: #{_lambda_.11} parent=39 // pred_region
        %s828 = smul.u32 32, %s16
      $region44: #{_lambda_.11} parent=39 // pred_fallthru
        _
    $region40: #{_lambda_.11} parent=5 // pred_fallthru
      _
    %p829 = scmp.le.s32.totalorder 2, %s11
    // Predicated region
    $region45: #{_lambda_.11} parent=5 // pred_check
      %p830 = pneg %p829
    $region46: #{_lambda_.11} parent=5 // pred_check_branch
      %832 = sbr.rel (%p830) target = $region48
    $region47: #{_lambda_.11} parent=5 // pred_region
      %s833 = ssub.s32 %s11, 2
      // Predicated region
      $region49: #{_lambda_.11} parent=47 // pred_check
        %p834 = pneg %p155
      $region50: #{_lambda_.11} parent=47 // pred_check_branch
        %836 = sbr.rel (%p834) target = $region52
      $region51: #{_lambda_.11} parent=47 // pred_region
        %s837 = smul.u32 32, %s17
        %p838 = scmp.lt.s32.totalorder %s837, 63
        %s839 = scalar_select %p838, %s837, 63
        %s840 = smul.addr %s839, 8
        %s841 = scalar_lea.vmem %s5, %s840
      $region52: #{_lambda_.11} parent=47 // pred_fallthru
        _
    $region48: #{_lambda_.11} parent=5 // pred_fallthru
      _
  $region6: #{_lambda_.11} parent=0 // loop_footer
    %s15 = sadd.s32 1, %s11
  $region7: #{_lambda_.11} parent=0 // loop_footer_branch
    %10 = sbr.rel target = $region3
  $region8: #{_lambda_.11} parent=0 // loop_exit
    _

// kernel: _lambda_.15
$region0: #{_lambda_.15}
  #allocation0 [shape = 'u32[]', space=smem, size = 0x4, offset = 0x4, fixed_abs, tag = 'smem constant byte address 0x4 - core index']
  #allocation1 [shape = 'u32[144,128]{1,0:T(1,128)}', space=vmem, size = 0x12000, scoped, tag = 'internal scratch']
  %s0 = inlined_call_operand.vmem [shape: f32[32,128], index: 0, kind: input, shape index: {}]
  %s1 = inlined_call_operand.vmem [shape: f32[2,128], index: 1, kind: input, shape index: {}]
  %s2 = inlined_call_operand.vmem [shape: f32[32,128], index: 2, kind: input, shape index: {}]
  %s3 = inlined_call_operand.vmem [shape: f32[32,128], index: 3, kind: output, shape index: {}]
  %s4 = sld [smem:[#allocation0]]
  $region22: #{_lambda_.15} parent=0
    _
  %s6 = ssub.s32 1, %s4
  %s7 = scalar_select 0, %s6, %s4
  // Predicated region
  $region2: #{_lambda_.15} parent=0 // pred_check
    _
  $region3: #{_lambda_.15} parent=0 // pred_check_branch
    %9 = sbr.rel (0) target = $region5
  $region4: #{_lambda_.15} parent=0 // pred_region
    _
  $region5: #{_lambda_.15} parent=0 // pred_fallthru
    _
  // Predicated region
  $region6: #{_lambda_.15} parent=0 // pred_check
    _
  $region7: #{_lambda_.15} parent=0 // pred_check_branch
    %11 = sbr.rel (0) target = $region9
  $region8: #{_lambda_.15} parent=0 // pred_region
    _
  $region9: #{_lambda_.15} parent=0 // pred_fallthru
    _
  // Predicated region
  $region10: #{_lambda_.15} parent=0 // pred_check
    _
  $region11: #{_lambda_.15} parent=0 // pred_check_branch
    %13 = sbr.rel (0) target = $region13
  $region12: #{_lambda_.15} parent=0 // pred_region
    _
  $region13: #{_lambda_.15} parent=0 // pred_fallthru
    _
  %v14 = vld [vmem:[%s0] sm:$0xff]
  %v15 = vld [vmem:[%s0 + $0x8] sm:$0xff]
  %v16 = vld [vmem:[%s0 + $0x10] sm:$0xff]
  %v17 = vld [vmem:[%s0 + $0x18] sm:$0xff]
  %v18 = vld [vmem:[%s1] sm:$0x1]
  %v19 = vlaneseq
  %v20 = vshrl.u32 %v19, 7
  %v21 = vsub.s32 0, %v20
  %v22 = vrot.slane %v18, %v21
  %v23 = vmul.f32 %v14, %v22
  %v24 = vmul.f32 %v15, %v22
  %v25 = vmul.f32 %v16, %v22
  %v26 = vmul.f32 %v17, %v22
  %v27 = vld [vmem:[%s1 + $0x1] sm:$0x1]
  %v28 = vlaneseq
  %v29 = vshrl.u32 %v28, 7
  %v30 = vsub.s32 0, %v29
  %v31 = vrot.slane %v27, %v30
  %v32 = vadd.f32 %v23, %v31
  %v33 = vadd.f32 %v24, %v31
  %v34 = vadd.f32 %v25, %v31
  %v35 = vadd.f32 %v26, %v31
  %v36 = vmax.f32 %v32, 0.0
  %v37 = vmax.f32 %v33, 0.0
  %v38 = vmax.f32 %v34, 0.0
  %v39 = vmax.f32 %v35, 0.0
  %v40 = vld [vmem:[%s2] sm:$0xff]
  %v41 = vld [vmem:[%s2 + $0x8] sm:$0xff]
  %v42 = vld [vmem:[%s2 + $0x10] sm:$0xff]
  %v43 = vld [vmem:[%s2 + $0x18] sm:$0xff]
  %v44 = vadd.f32 %v36, %v40
  %v45 = vadd.f32 %v37, %v41
  %v46 = vadd.f32 %v38, %v42
  %v47 = vadd.f32 %v39, %v43
  %48 = vst [vmem:[%s3] sm:$0xff] %v44
  %49 = vst [vmem:[%s3 + $0x8] sm:$0xff] %v45
  %50 = vst [vmem:[%s3 + $0x10] sm:$0xff] %v46
  %51 = vst [vmem:[%s3 + $0x18] sm:$0xff] %v47
  // Predicated region
  $region14: #{_lambda_.15} parent=0 // pred_check
    _
  $region15: #{_lambda_.15} parent=0 // pred_check_branch
    %53 = sbr.rel (0) target = $region17
  $region16: #{_lambda_.15} parent=0 // pred_region
    _
  $region17: #{_lambda_.15} parent=0 // pred_fallthru
    _
  // Predicated region
  $region18: #{_lambda_.15} parent=0 // pred_check
    _
  $region19: #{_lambda_.15} parent=0 // pred_check_branch
    %55 = sbr.rel (0) target = $region21
  $region20: #{_lambda_.15} parent=0 // pred_region
    _
  $region21: #{_lambda_.15} parent=0 // pred_fallthru
    _

</llo_original>
